<compile_context>
chip_gen: v6e
topology: v6e:2x2x1
jax: 0.10.0
libtpu: 0.0.40
codegen_flags: <defaults>
</compile_context>

<pallas_src>
import jax
import jax.numpy as jnp
from jax.experimental import pallas as pl
from jax.experimental.pallas import tpu as pltpu


def _round_up(x, m):
    return ((x + m - 1) // m) * m


def _make_kernel(*, N, K, TR, LN, nb, tpc, SS, A):
    """Kernel body with static geometry baked in via closure."""
    C = K - 5
    inv_ss = 1.0 / float(SS)          # compile-time reciprocals (no vector divides)
    inv_a = 1.0 / float(A)
    eps_ss = 0.5 * inv_ss             # < 1/SS and > f32 rounding error (N < 2**22)
    eps_a = 0.5 * inv_a

    def kernel(anch_ref, pred_ref, targ_ref, out_ref, acc_ref):
        # anch_ref : SMEM (4*A,) f32   [w, h, 1/w, 1/h] per anchor
        # pred_ref : VMEM (TR, K)      natural cell-major block (no HBM transpose)
        # targ_ref : VMEM (TR, 6)
        # out_ref  : VMEM (6, 8, LN)   per-core output slab (written once)
        # acc_ref  : VMEM (6, 8, LN)   scratch accumulator, persists across steps
        c = pl.program_id(0)          # core axis
        t = pl.program_id(1)          # reduction axis (tiles for this core)

        @pl.when(t == 0)
        def _init():
            acc_ref[...] = jnp.zeros(acc_ref.shape, acc_ref.dtype)

        blk = c * tpc + t

        @pl.when(blk < nb)            # scalar gate: skip clamped duplicate steps
        def _accumulate():
            p = pred_ref[...].astype(jnp.float32)      # upcast (bf16-friendly)
            g = targ_ref[...].astype(jnp.float32)

            # Feature-major, dense fold: cells land on (sublane, lane); one
            # per-tile XLU transpose instead of a wrapper-side HBM transpose.
            feat = jnp.transpose(p).reshape(K, 8, LN)  # (K, 8, LN)
            targ = jnp.transpose(g).reshape(6, 8, LN)  # (6, 8, LN)

            # Global cell id of position (s, l) is blk*TR + s*LN + l.
            s_id = jax.lax.broadcasted_iota(jnp.int32, (8, LN), 0)
            l_id = jax.lax.broadcasted_iota(jnp.int32, (8, LN), 1)
            rid = blk * TR + s_id * LN + l_id
            valid = rid < N            # masks pad rows of an oversized block 0

            tobj = targ[0]
            obj_m = jnp.logical_and(tobj == 1.0, valid)
            noobj_m = jnp.logical_and(tobj == 0.0, valid)

            # ---- per-cell anchor from SMEM: index = (rid // S*S) % A --------
            rf = rid.astype(jnp.float32)
            q = jnp.floor(rf * inv_ss + eps_ss)
            aidx = q - float(A) * jnp.floor(q * inv_a + eps_a)
            aw = jnp.zeros_like(rf)
            ah = jnp.zeros_like(rf)
            iaw = jnp.zeros_like(rf)
            iah = jnp.zeros_like(rf)
            for a in range(A):
                sel = aidx == float(a)
                aw = jnp.where(sel, anch_ref[4 * a + 0], aw)
                ah = jnp.where(sel, anch_ref[4 * a + 1], ah)
                iaw = jnp.where(sel, anch_ref[4 * a + 2], iaw)
                iah = jnp.where(sel, anch_ref[4 * a + 3], iah)

            # ---- objectness: shared exp(-|x0|) for BCE-with-logits + sigmoid
            x0 = feat[0]
            e0 = jnp.exp(-jnp.abs(x0))
            bce = jnp.maximum(x0, 0.0) - x0 * tobj + jnp.log(1.0 + e0)
            sig_pos = 1.0 / (1.0 + e0)
            sobj = jnp.where(x0 >= 0.0, sig_pos, 1.0 - sig_pos)

            # ---- decoded boxes + IoU ------------------------------------------
            x1, x2, p3, p4 = feat[1], feat[2], feat[3], feat[4]
            px = 1.0 / (1.0 + jnp.exp(-x1))
            py = 1.0 / (1.0 + jnp.exp(-x2))
            pw = jnp.exp(p3) * aw
            ph = jnp.exp(p4) * ah
            tx, ty, tw, th = targ[1], targ[2], targ[3], targ[4]

            b1x1 = px - 0.5 * pw
            b1x2 = px + 0.5 * pw
            b1y1 = py - 0.5 * ph
            b1y2 = py + 0.5 * ph
            b2x1 = tx - 0.5 * tw
            b2x2 = tx + 0.5 * tw
            b2y1 = ty - 0.5 * th
            b2y2 = ty + 0.5 * th
            iw = jnp.maximum(jnp.minimum(b1x2, b2x2) - jnp.maximum(b1x1, b2x1), 0.0)
            ih = jnp.maximum(jnp.minimum(b1y2, b2y2) - jnp.maximum(b1y1, b2y1), 0.0)
            inter = iw * ih
            a1 = jnp.abs((b1x2 - b1x1) * (b1y2 - b1y1))
            a2 = jnp.abs((b2x2 - b2x1) * (b2y2 - b2y1))
            ious = inter * pl.reciprocal(a1 + a2 - inter + 1e-6, approx=True)

            # ---- object / box / class terms -----------------------------------
            obj_se = (sobj - ious * tobj) ** 2
            box_se = ((px - tx) ** 2 + (py - ty) ** 2
                      + (p3 - jnp.log(1e-6 + tw * iaw)) ** 2
                      + (p4 - jnp.log(1e-6 + th * iah)) ** 2)

            logits = feat[5:]                               # (C, 8, LN)
            cls_idx = targ[5].astype(jnp.int32)
            mx = jnp.max(logits, axis=0)
            # NOTE: for large C this sum could be moved to the idle MXU
            # (jnp.dot with a ones row); small C keeps it on the VPU.
            lse = mx + jnp.log(jnp.sum(jnp.exp(logits - mx), axis=0))
            cio = jax.lax.broadcasted_iota(jnp.int32, (C, 8, LN), 0)
            picked = jnp.sum(jnp.where(cio == cls_idx, logits, 0.0), axis=0)
            ce = lse - picked

            # ---- dense (8, LN) partial-sum accumulation -----------------------
            acc_ref[0] += jnp.where(obj_m, box_se, 0.0)
            acc_ref[1] += jnp.where(obj_m, obj_se, 0.0)
            acc_ref[2] += jnp.where(noobj_m, bce, 0.0)
            acc_ref[3] += jnp.where(obj_m, ce, 0.0)
            acc_ref[4] += obj_m.astype(jnp.float32)
            acc_ref[5] += noobj_m.astype(jnp.float32)

        @pl.when(t == tpc - 1)
        def _finalize():
            out_ref[...] = acc_ref[...]

    return kernel


def _partial_sums_jax(pred2d, targ2d, anchors, row0, SS):
    """Pure-JAX partial sums for the (< one tile) tail rows."""
    p = pred2d.astype(jnp.float32)
    g = targ2d.astype(jnp.float32)
    A = anchors.shape[0]
    rows = row0 + jnp.arange(p.shape[0])
    aidx = (rows // SS) % A
    aw = anchors[aidx, 0]
    ah = anchors[aidx, 1]

    tobj = g[:, 0]
    obj = tobj == 1.0
    noobj = tobj == 0.0

    x0 = p[:, 0]
    e0 = jnp.exp(-jnp.abs(x0))
    bce = jnp.maximum(x0, 0.0) - x0 * tobj + jnp.log(1.0 + e0)
    sig_pos = 1.0 / (1.0 + e0)
    sobj = jnp.where(x0 >= 0.0, sig_pos, 1.0 - sig_pos)

    px = 1.0 / (1.0 + jnp.exp(-p[:, 1]))
    py = 1.0 / (1.0 + jnp.exp(-p[:, 2]))
    pw = jnp.exp(p[:, 3]) * aw
    ph = jnp.exp(p[:, 4]) * ah
    tx, ty, tw, th = g[:, 1], g[:, 2], g[:, 3], g[:, 4]

    b1x1, b1x2 = px - 0.5 * pw, px + 0.5 * pw
    b1y1, b1y2 = py - 0.5 * ph, py + 0.5 * ph
    b2x1, b2x2 = tx - 0.5 * tw, tx + 0.5 * tw
    b2y1, b2y2 = ty - 0.5 * th, ty + 0.5 * th
    iw = jnp.maximum(jnp.minimum(b1x2, b2x2) - jnp.maximum(b1x1, b2x1), 0.0)
    ih = jnp.maximum(jnp.minimum(b1y2, b2y2) - jnp.maximum(b1y1, b2y1), 0.0)
    inter = iw * ih
    a1 = jnp.abs((b1x2 - b1x1) * (b1y2 - b1y1))
    a2 = jnp.abs((b2x2 - b2x1) * (b2y2 - b2y1))
    ious = inter / (a1 + a2 - inter + 1e-6)

    obj_se = (sobj - ious * tobj) ** 2
    box_se = ((px - tx) ** 2 + (py - ty) ** 2
              + (p[:, 3] - jnp.log(1e-6 + tw / aw)) ** 2
              + (p[:, 4] - jnp.log(1e-6 + th / ah)) ** 2)

    logits = p[:, 5:]
    cls_idx = g[:, 5].astype(jnp.int32)
    mx = jnp.max(logits, axis=-1)
    lse = mx + jnp.log(jnp.sum(jnp.exp(logits - mx[:, None]), axis=-1))
    picked = jnp.take_along_axis(logits, cls_idx[:, None], axis=-1)[:, 0]
    ce = lse - picked

    return jnp.stack([
        jnp.sum(jnp.where(obj, box_se, 0.0)),
        jnp.sum(jnp.where(obj, obj_se, 0.0)),
        jnp.sum(jnp.where(noobj, bce, 0.0)),
        jnp.sum(jnp.where(obj, ce, 0.0)),
        jnp.sum(obj.astype(jnp.float32)),
        jnp.sum(noobj.astype(jnp.float32)),
    ])


def yolo_loss_pallas(pred, target, anchors, *, tile_rows=16384, n_cores=1,
                     core_parallel=False):
    """YOLO loss over one prediction scale.

    pred    : (B, A, S, S, 5 + C)   f32 or bf16 (upcast in-kernel)
    target  : (B, A, S, S, 6)       [obj, x, y, w, h, class]
    anchors : (A, 2)
    n_cores : 1 on v5e/v6e (single TensorCore); 2 on v7x.
    """
    B, A, S1, S2, K = pred.shape
    assert target.shape == (B, A, S1, S2, 6)
    N = B * A * S1 * S2
    SS = S1 * S2
    # Float anchor-index math (reciprocal multiply + eps) is exact only while
    # cell ids stay well inside f32 integer range; fail loudly otherwise.
    assert N < (1 << 22), "yolo_loss_pallas: N must be < 2**22"

    pred2d = pred.reshape(N, K)        # free reshape: no HBM transpose (item 1)
    targ2d = target.reshape(N, 6)      # no wrapper-side astype copy (item 10)
    anch32 = anchors.astype(jnp.float32)
    anch_s = jnp.stack(
        [anch32[:, 0], anch32[:, 1], 1.0 / anch32[:, 0], 1.0 / anch32[:, 1]],
        axis=1).reshape(4 * A)         # [w, h, 1/w, 1/h] per anchor -> SMEM

    if N <= tile_rows:
        # Single block starting at row 0; pad rows are masked in-kernel.
        TR = _round_up(N, 1024)
        nb, tail = 1, 0
    else:
        # Only exact, fully in-bounds blocks go through the kernel; the ragged
        # tail (< TR rows) is summed in plain JAX (tiny, robust).
        TR = (tile_rows // 1024) * 1024 if tile_rows >= 1024 \
            else max(8, (tile_rows // 8) * 8)
        nb = N // TR
        tail = N - nb * TR
    LN = TR // 8

    n_cores = max(1, min(n_cores, nb))
    tpc = pl.cdiv(nb, n_cores)         # tiles per core
    last_blk = nb - 1

    def in_map(c, t):
        # Spare steps on the last core re-fetch an in-bounds block; they are
        # skipped entirely inside the kernel via the blk < nb gate.
        return (jnp.minimum(c * tpc + t, last_blk), 0)

    kernel = _make_kernel(N=N, K=K, TR=TR, LN=LN, nb=nb, tpc=tpc, SS=SS, A=A)

    sem0 = pltpu.CORE_PARALLEL if (core_parallel and n_cores > 1) else "parallel"

    part = pl.pallas_call(
        kernel,
        out_shape=jax.ShapeDtypeStruct((n_cores, 6, 8, LN), jnp.float32),
        grid_spec=pltpu.PrefetchScalarGridSpec(
            num_scalar_prefetch=0,
            grid=(n_cores, tpc),
            in_specs=[
                pl.BlockSpec(memory_space=pltpu.MemorySpace.SMEM),   # anchors
                pl.BlockSpec((TR, K), in_map),                       # pred
                pl.BlockSpec((TR, 6), in_map),                       # target
            ],
            out_specs=pl.BlockSpec((None, 6, 8, LN), lambda c, t: (c, 0, 0, 0)),
            scratch_shapes=[pltpu.VMEM((6, 8, LN), jnp.float32)],
        ),
        compiler_params=pltpu.CompilerParams(
            dimension_semantics=(sem0, "arbitrary")),
        # NOTE: for COCO-sized C on v5e, lower tile_rows or raise
        # vmem_limit_bytes here (review items 6/7).
    )(anch_s, pred2d, targ2d)

    sums = jnp.sum(part, axis=(0, 2, 3))               # (6,)
    if tail:
        sums = sums + _partial_sums_jax(pred2d[nb * TR:], targ2d[nb * TR:],
                                        anch32, nb * TR, SS)

    n_obj = sums[4]
    n_noobj = sums[5]
    # NOTE: like the PyTorch reference, n_obj == 0 or n_noobj == 0 gives NaN/Inf.
    return (sums[0] / (4.0 * n_obj)    # box loss   (MSE over n_obj * 4)
            + sums[1] / n_obj          # object loss
            + sums[2] / n_noobj        # no-object loss
            + sums[3] / n_obj)         # class loss


def yolo_loss_reference(pred, target, anchors):
    """Pure-JAX replica of the PyTorch YOLO loss semantics."""
    pred = pred.astype(jnp.float32)
    target = target.astype(jnp.float32)
    A = anchors.shape[0]
    anch = anchors.reshape(1, A, 1, 1, 2).astype(jnp.float32)

    def sigmoid(x):
        return 1.0 / (1.0 + jnp.exp(-x))

    tobj = target[..., 0:1]
    obj = tobj == 1.0
    noobj = tobj == 0.0
    n_obj = jnp.sum(obj.astype(jnp.float32))
    n_noobj = jnp.sum(noobj.astype(jnp.float32))

    x0 = pred[..., 0:1]
    bce = jnp.maximum(x0, 0.0) - x0 * tobj + jnp.log(1.0 + jnp.exp(-jnp.abs(x0)))
    no_object_loss = jnp.sum(jnp.where(noobj, bce, 0.0)) / n_noobj

    pxy = sigmoid(pred[..., 1:3])
    pwh = jnp.exp(pred[..., 3:5]) * anch
    txy = target[..., 1:3]
    twh = target[..., 3:5]

    b1x1 = pxy[..., 0:1] - pwh[..., 0:1] / 2
    b1y1 = pxy[..., 1:2] - pwh[..., 1:2] / 2
    b1x2 = pxy[..., 0:1] + pwh[..., 0:1] / 2
    b1y2 = pxy[..., 1:2] + pwh[..., 1:2] / 2
    b2x1 = txy[..., 0:1] - twh[..., 0:1] / 2
    b2y1 = txy[..., 1:2] - twh[..., 1:2] / 2
    b2x2 = txy[..., 0:1] + twh[..., 0:1] / 2
    b2y2 = txy[..., 1:2] + twh[..., 1:2] / 2
    inter = (jnp.maximum(jnp.minimum(b1x2, b2x2) - jnp.maximum(b1x1, b2x1), 0.0)
             * jnp.maximum(jnp.minimum(b1y2, b2y2) - jnp.maximum(b1y1, b2y1), 0.0))
    a1 = jnp.abs((b1x2 - b1x1) * (b1y2 - b1y1))
    a2 = jnp.abs((b2x2 - b2x1) * (b2y2 - b2y1))
    ious = inter / (a1 + a2 - inter + 1e-6)

    object_loss = jnp.sum(jnp.where(obj, (sigmoid(x0) - ious * tobj) ** 2, 0.0)) / n_obj

    t_wh_log = jnp.log(1e-6 + twh / anch)
    box_se = jnp.sum((jnp.concatenate([pxy, pred[..., 3:5]], -1)
                      - jnp.concatenate([txy, t_wh_log], -1)) ** 2, -1, keepdims=True)
    box_loss = jnp.sum(jnp.where(obj, box_se, 0.0)) / (4.0 * n_obj)

    logits = pred[..., 5:]
    cls_idx = target[..., 5:6].astype(jnp.int32)
    mx = jnp.max(logits, -1, keepdims=True)
    lse = mx + jnp.log(jnp.sum(jnp.exp(logits - mx), -1, keepdims=True))
    iota = jax.lax.broadcasted_iota(jnp.int32, logits.shape, logits.ndim - 1)
    picked = jnp.sum(jnp.where(iota == cls_idx, logits, 0.0), -1, keepdims=True)
    class_loss = jnp.sum(jnp.where(obj, lse - picked, 0.0)) / n_obj

    return box_loss + object_loss + no_object_loss + class_loss


if __name__ == "__main__":
    # Shapes consistent with YOLOv3(num_classes=4) at one prediction scale.
    B, A, S, C = 2, 3, 13, 4
    key = jax.random.PRNGKey(0)
    k1, k2, k3, k4, k5, k6 = jax.random.split(key, 6)

    pred = jax.random.normal(k1, (B, A, S, S, 5 + C), dtype=jnp.float32)
    obj = (jax.random.uniform(k2, (B, A, S, S, 1)) < 0.3).astype(jnp.float32)
    xy = jax.random.uniform(k3, (B, A, S, S, 2), minval=0.0, maxval=1.0)
    wh = jax.random.uniform(k4, (B, A, S, S, 2), minval=0.1, maxval=2.0)
    cls = jax.random.randint(k5, (B, A, S, S, 1), 0, C).astype(jnp.float32)
    target = jnp.concatenate([obj, xy, wh, cls], axis=-1)
    anchors = jax.random.uniform(k6, (A, 2), minval=0.5, maxval=2.0)

    ref = jax.block_until_ready(yolo_loss_reference(pred, target, anchors))

    # Default config: one 1024-row block, single core (v5e/v6e default).
    loss = jax.block_until_ready(yolo_loss_pallas(pred, target, anchors))
    assert jnp.isfinite(loss), "kernel produced non-finite loss"
    assert jnp.allclose(loss, ref, rtol=2e-3, atol=2e-3), (loss, ref)

    # Stress config: 256-row blocks, 2-way core axis (exercises the gated
    # duplicate step, multi-step scratch accumulation, and the JAX tail).
    loss2 = jax.block_until_ready(
        yolo_loss_pallas(pred, target, anchors, tile_rows=256, n_cores=2))
    assert jnp.isfinite(loss2), "kernel produced non-finite loss (stress config)"
    assert jnp.allclose(loss2, ref, rtol=2e-3, atol=2e-3), (loss2, ref)

    # TODO(synk): the YOLOv3 conv/BN/LeakyReLU backbone and ScalePrediction
    # convs are not re-implemented as Pallas kernels; this kernel covers the
    # YOLO loss head over ScalePrediction outputs (as in the prior review
    # cycle) and leaves the conv stack to XLA.
    print("KERNEL_OK")
</pallas_src>

<mosaic_0001>
module attributes {stable_mosaic.version = 11 : i64} {
  func.func @kernel(%arg0: i32, %arg1: i32, %arg2: memref<12xf32, #tpu.memory_space<smem>>, %arg3: memref<1024x9xf32, #tpu.memory_space<vmem>>, %arg4: memref<1024x6xf32, #tpu.memory_space<vmem>>, %arg5: memref<1x6x8x128xf32, #tpu.memory_space<vmem>>, %arg6: memref<6x8x128xf32, #tpu.memory_space<vmem>>) attributes {dimension_semantics = [#tpu.dimension_semantics<parallel>, #tpu.dimension_semantics<arbitrary>], iteration_bounds = array<i64: 1, 1>, scalar_prefetch = 0 : i64, scratch_operands = 1 : i64, tpu.core_type = #tpu.core_type<tc>, window_params = [{transform_indices = @transform_0, window_bounds = array<i64: 12>}, {transform_indices = @transform_1, window_bounds = array<i64: 1024, 9>}, {transform_indices = @transform_2, window_bounds = array<i64: 1024, 6>}, {transform_indices = @transform_3, window_bounds = array<i64: 1, 6, 8, 128>}]} {
    %c0_i32 = arith.constant 0 : i32
    %0 = arith.cmpi eq, %arg1, %c0_i32 : i32
    %1 = arith.extui %0 : i1 to i32
    %c0_i32_0 = arith.constant 0 : i32
    %2 = arith.cmpi ne, %1, %c0_i32_0 : i32
    scf.if %2 {
      %cst = arith.constant 0.000000e+00 : f32
      %11 = vector.broadcast %cst : f32 to vector<6x8x128xf32>
      %c0 = arith.constant 0 : index
      %c0_5 = arith.constant 0 : index
      %c0_6 = arith.constant 0 : index
      %12 = vector.load %arg6[%c0, %c0_5, %c0_6] : memref<6x8x128xf32, #tpu.memory_space<vmem>>, vector<6x8x128xf32>
      tpu.vector_store %arg6[%c0, %c0_5, %c0_6], %11 {strides = array<i32>} : memref<6x8x128xf32, #tpu.memory_space<vmem>>, vector<6x8x128xf32>,
    } else {
    }
    %c1_i32 = arith.constant 1 : i32
    %3 = arith.muli %arg0, %c1_i32 : i32
    %4 = arith.addi %3, %arg1 : i32
    %c1_i32_1 = arith.constant 1 : i32
    %5 = arith.cmpi slt, %4, %c1_i32_1 : i32
    %6 = arith.extui %5 : i1 to i32
    %c0_i32_2 = arith.constant 0 : i32
    %7 = arith.cmpi ne, %6, %c0_i32_2 : i32
    scf.if %7 {
      %c0 = arith.constant 0 : index
      %c0_5 = arith.constant 0 : index
      %11 = vector.load %arg3[%c0, %c0_5] : memref<1024x9xf32, #tpu.memory_space<vmem>>, vector<1024x9xf32>
      %c0_6 = arith.constant 0 : index
      %c0_7 = arith.constant 0 : index
      %12 = vector.load %arg4[%c0_6, %c0_7] : memref<1024x6xf32, #tpu.memory_space<vmem>>, vector<1024x6xf32>
      %13 = tpu.transpose %11, [1, 0] : vector<1024x9xf32> -> vector<9x1024xf32>
      %14 = vector.shape_cast %13 : vector<9x1024xf32> to vector<9x8x128xf32>
      %15 = tpu.transpose %12, [1, 0] : vector<1024x6xf32> -> vector<6x1024xf32>
      %16 = vector.shape_cast %15 : vector<6x1024xf32> to vector<6x8x128xf32>
      %17 = tpu.iota {dimensions = array<i32: 0>} : vector<8x128xi32>
      %18 = tpu.iota {dimensions = array<i32: 1>} : vector<8x128xi32>
      %c1024_i32 = arith.constant 1024 : i32
      %19 = arith.muli %4, %c1024_i32 : i32
      %c128_i32 = arith.constant 128 : i32
      %20 = vector.broadcast %c128_i32 : i32 to vector<8x128xi32>
      %21 = arith.muli %17, %20 : vector<8x128xi32>
      %22 = vector.broadcast %19 : i32 to vector<8x128xi32>
      %23 = arith.addi %22, %21 : vector<8x128xi32>
      %24 = arith.addi %23, %18 : vector<8x128xi32>
      %c1014_i32 = arith.constant 1014 : i32
      %25 = vector.broadcast %c1014_i32 : i32 to vector<8x128xi32>
      %26 = arith.cmpi slt, %24, %25 : vector<8x128xi32>
      %27 = vector.extract_strided_slice %16 {offsets = [0, 0, 0], sizes = [1, 8, 128], strides = [1, 1, 1]} : vector<6x8x128xf32> to vector<1x8x128xf32>
      %28 = vector.shape_cast %27 : vector<1x8x128xf32> to vector<8x128xf32>
      %cst = arith.constant 1.000000e+00 : f32
      %29 = vector.broadcast %cst : f32 to vector<8x128xf32>
      %30 = arith.cmpf oeq, %28, %29 : vector<8x128xf32>
      %31 = arith.andi %30, %26 : vector<8x128xi1>
      %cst_8 = arith.constant 0.000000e+00 : f32
      %32 = vector.broadcast %cst_8 : f32 to vector<8x128xf32>
      %33 = arith.cmpf oeq, %28, %32 : vector<8x128xf32>
      %34 = arith.andi %33, %26 : vector<8x128xi1>
      %35 = arith.sitofp %24 : vector<8x128xi32> to vector<8x128xf32>
      %cst_9 = arith.constant 5.917160e-03 : f32
      %36 = vector.broadcast %cst_9 : f32 to vector<8x128xf32>
      %37 = arith.mulf %35, %36 : vector<8x128xf32>
      %cst_10 = arith.constant 2.958580e-03 : f32
      %38 = vector.broadcast %cst_10 : f32 to vector<8x128xf32>
      %39 = arith.addf %37, %38 : vector<8x128xf32>
      %40 = math.floor %39 : vector<8x128xf32>
      %cst_11 = arith.constant 0.333333343 : f32
      %41 = vector.broadcast %cst_11 : f32 to vector<8x128xf32>
      %42 = arith.mulf %40, %41 : vector<8x128xf32>
      %cst_12 = arith.constant 0.166666672 : f32
      %43 = vector.broadcast %cst_12 : f32 to vector<8x128xf32>
      %44 = arith.addf %42, %43 : vector<8x128xf32>
      %45 = math.floor %44 : vector<8x128xf32>
      %cst_13 = arith.constant 3.000000e+00 : f32
      %46 = vector.broadcast %cst_13 : f32 to vector<8x128xf32>
      %47 = arith.mulf %46, %45 : vector<8x128xf32>
      %48 = arith.subf %40, %47 : vector<8x128xf32>
      %cst_14 = arith.constant 0.000000e+00 : f32
      %49 = vector.broadcast %cst_14 : f32 to vector<8x128xf32>
      %cst_15 = arith.constant 0.000000e+00 : f32
      %50 = vector.broadcast %cst_15 : f32 to vector<8x128xf32>
      %cst_16 = arith.constant 0.000000e+00 : f32
      %51 = vector.broadcast %cst_16 : f32 to vector<8x128xf32>
      %cst_17 = arith.constant 0.000000e+00 : f32
      %52 = vector.broadcast %cst_17 : f32 to vector<8x128xf32>
      %cst_18 = arith.constant 0.000000e+00 : f32
      %53 = vector.broadcast %cst_18 : f32 to vector<8x128xf32>
      %54 = arith.cmpf oeq, %48, %53 : vector<8x128xf32>
      %c0_19 = arith.constant 0 : index
      %55 = memref.load %arg2[%c0_19] : memref<12xf32, #tpu.memory_space<smem>>
      %56 = vector.broadcast %55 : f32 to vector<8x128xf32>
      %57 = arith.select %54, %56, %49 : vector<8x128xi1>, vector<8x128xf32>
      %c1 = arith.constant 1 : index
      %58 = memref.load %arg2[%c1] : memref<12xf32, #tpu.memory_space<smem>>
      %59 = vector.broadcast %58 : f32 to vector<8x128xf32>
      %60 = arith.select %54, %59, %50 : vector<8x128xi1>, vector<8x128xf32>
      %c2 = arith.constant 2 : index
      %61 = memref.load %arg2[%c2] : memref<12xf32, #tpu.memory_space<smem>>
      %62 = vector.broadcast %61 : f32 to vector<8x128xf32>
      %63 = arith.select %54, %62, %51 : vector<8x128xi1>, vector<8x128xf32>
      %c3 = arith.constant 3 : index
      %64 = memref.load %arg2[%c3] : memref<12xf32, #tpu.memory_space<smem>>
      %65 = vector.broadcast %64 : f32 to vector<8x128xf32>
      %66 = arith.select %54, %65, %52 : vector<8x128xi1>, vector<8x128xf32>
      %cst_20 = arith.constant 1.000000e+00 : f32
      %67 = vector.broadcast %cst_20 : f32 to vector<8x128xf32>
      %68 = arith.cmpf oeq, %48, %67 : vector<8x128xf32>
      %c4 = arith.constant 4 : index
      %69 = memref.load %arg2[%c4] : memref<12xf32, #tpu.memory_space<smem>>
      %70 = vector.broadcast %69 : f32 to vector<8x128xf32>
      %71 = arith.select %68, %70, %57 : vector<8x128xi1>, vector<8x128xf32>
      %c5 = arith.constant 5 : index
      %72 = memref.load %arg2[%c5] : memref<12xf32, #tpu.memory_space<smem>>
      %73 = vector.broadcast %72 : f32 to vector<8x128xf32>
      %74 = arith.select %68, %73, %60 : vector<8x128xi1>, vector<8x128xf32>
      %c6 = arith.constant 6 : index
      %75 = memref.load %arg2[%c6] : memref<12xf32, #tpu.memory_space<smem>>
      %76 = vector.broadcast %75 : f32 to vector<8x128xf32>
      %77 = arith.select %68, %76, %63 : vector<8x128xi1>, vector<8x128xf32>
      %c7 = arith.constant 7 : index
      %78 = memref.load %arg2[%c7] : memref<12xf32, #tpu.memory_space<smem>>
      %79 = vector.broadcast %78 : f32 to vector<8x128xf32>
      %80 = arith.select %68, %79, %66 : vector<8x128xi1>, vector<8x128xf32>
      %cst_21 = arith.constant 2.000000e+00 : f32
      %81 = vector.broadcast %cst_21 : f32 to vector<8x128xf32>
      %82 = arith.cmpf oeq, %48, %81 : vector<8x128xf32>
      %c8 = arith.constant 8 : index
      %83 = memref.load %arg2[%c8] : memref<12xf32, #tpu.memory_space<smem>>
      %84 = vector.broadcast %83 : f32 to vector<8x128xf32>
      %85 = arith.select %82, %84, %71 : vector<8x128xi1>, vector<8x128xf32>
      %c9 = arith.constant 9 : index
      %86 = memref.load %arg2[%c9] : memref<12xf32, #tpu.memory_space<smem>>
      %87 = vector.broadcast %86 : f32 to vector<8x128xf32>
      %88 = arith.select %82, %87, %74 : vector<8x128xi1>, vector<8x128xf32>
      %c10 = arith.constant 10 : index
      %89 = memref.load %arg2[%c10] : memref<12xf32, #tpu.memory_space<smem>>
      %90 = vector.broadcast %89 : f32 to vector<8x128xf32>
      %91 = arith.select %82, %90, %77 : vector<8x128xi1>, vector<8x128xf32>
      %c11 = arith.constant 11 : index
      %92 = memref.load %arg2[%c11] : memref<12xf32, #tpu.memory_space<smem>>
      %93 = vector.broadcast %92 : f32 to vector<8x128xf32>
      %94 = arith.select %82, %93, %80 : vector<8x128xi1>, vector<8x128xf32>
      %95 = vector.extract_strided_slice %14 {offsets = [0, 0, 0], sizes = [1, 8, 128], strides = [1, 1, 1]} : vector<9x8x128xf32> to vector<1x8x128xf32>
      %96 = vector.shape_cast %95 : vector<1x8x128xf32> to vector<8x128xf32>
      %97 = math.absf %96 : vector<8x128xf32>
      %cst_22 = arith.constant 0.000000e+00 : f32
      %98 = vector.broadcast %cst_22 : f32 to vector<8x128xf32>
      %99 = arith.subf %98, %97 : vector<8x128xf32>
      %100 = math.exp %99 : vector<8x128xf32>
      %cst_23 = arith.constant 0.000000e+00 : f32
      %101 = vector.broadcast %cst_23 : f32 to vector<8x128xf32>
      %102 = arith.maximumf %96, %101 : vector<8x128xf32>
      %103 = arith.mulf %96, %28 : vector<8x128xf32>
      %104 = arith.subf %102, %103 : vector<8x128xf32>
      %cst_24 = arith.constant 1.000000e+00 : f32
      %105 = vector.broadcast %cst_24 : f32 to vector<8x128xf32>
      %106 = arith.addf %105, %100 : vector<8x128xf32>
      %107 = math.log %106 : vector<8x128xf32>
      %108 = arith.addf %104, %107 : vector<8x128xf32>
      %cst_25 = arith.constant 1.000000e+00 : f32
      %109 = vector.broadcast %cst_25 : f32 to vector<8x128xf32>
      %110 = arith.addf %109, %100 : vector<8x128xf32>
      %cst_26 = arith.constant 1.000000e+00 : f32
      %111 = vector.broadcast %cst_26 : f32 to vector<8x128xf32>
      %112 = arith.divf %111, %110 : vector<8x128xf32>
      %cst_27 = arith.constant 0.000000e+00 : f32
      %113 = vector.broadcast %cst_27 : f32 to vector<8x128xf32>
      %114 = arith.cmpf oge, %96, %113 : vector<8x128xf32>
      %cst_28 = arith.constant 1.000000e+00 : f32
      %115 = vector.broadcast %cst_28 : f32 to vector<8x128xf32>
      %116 = arith.subf %115, %112 : vector<8x128xf32>
      %117 = arith.select %114, %112, %116 : vector<8x128xi1>, vector<8x128xf32>
      %118 = vector.extract_strided_slice %14 {offsets = [1, 0, 0], sizes = [1, 8, 128], strides = [1, 1, 1]} : vector<9x8x128xf32> to vector<1x8x128xf32>
      %119 = vector.shape_cast %118 : vector<1x8x128xf32> to vector<8x128xf32>
      %120 = vector.extract_strided_slice %14 {offsets = [2, 0, 0], sizes = [1, 8, 128], strides = [1, 1, 1]} : vector<9x8x128xf32> to vector<1x8x128xf32>
      %121 = vector.shape_cast %120 : vector<1x8x128xf32> to vector<8x128xf32>
      %122 = vector.extract_strided_slice %14 {offsets = [3, 0, 0], sizes = [1, 8, 128], strides = [1, 1, 1]} : vector<9x8x128xf32> to vector<1x8x128xf32>
      %123 = vector.shape_cast %122 : vector<1x8x128xf32> to vector<8x128xf32>
      %124 = vector.extract_strided_slice %14 {offsets = [4, 0, 0], sizes = [1, 8, 128], strides = [1, 1, 1]} : vector<9x8x128xf32> to vector<1x8x128xf32>
      %125 = vector.shape_cast %124 : vector<1x8x128xf32> to vector<8x128xf32>
      %cst_29 = arith.constant 0.000000e+00 : f32
      %126 = vector.broadcast %cst_29 : f32 to vector<8x128xf32>
      %127 = arith.subf %126, %119 : vector<8x128xf32>
      %128 = math.exp %127 : vector<8x128xf32>
      %cst_30 = arith.constant 1.000000e+00 : f32
      %129 = vector.broadcast %cst_30 : f32 to vector<8x128xf32>
      %130 = arith.addf %129, %128 : vector<8x128xf32>
      %cst_31 = arith.constant 1.000000e+00 : f32
      %131 = vector.broadcast %cst_31 : f32 to vector<8x128xf32>
      %132 = arith.divf %131, %130 : vector<8x128xf32>
      %cst_32 = arith.constant 0.000000e+00 : f32
      %133 = vector.broadcast %cst_32 : f32 to vector<8x128xf32>
      %134 = arith.subf %133, %121 : vector<8x128xf32>
      %135 = math.exp %134 : vector<8x128xf32>
      %cst_33 = arith.constant 1.000000e+00 : f32
      %136 = vector.broadcast %cst_33 : f32 to vector<8x128xf32>
      %137 = arith.addf %136, %135 : vector<8x128xf32>
      %cst_34 = arith.constant 1.000000e+00 : f32
      %138 = vector.broadcast %cst_34 : f32 to vector<8x128xf32>
      %139 = arith.divf %138, %137 : vector<8x128xf32>
      %140 = math.exp %123 : vector<8x128xf32>
      %141 = arith.mulf %140, %85 : vector<8x128xf32>
      %142 = math.exp %125 : vector<8x128xf32>
      %143 = arith.mulf %142, %88 : vector<8x128xf32>
      %144 = vector.extract_strided_slice %16 {offsets = [1, 0, 0], sizes = [1, 8, 128], strides = [1, 1, 1]} : vector<6x8x128xf32> to vector<1x8x128xf32>
      %145 = vector.shape_cast %144 : vector<1x8x128xf32> to vector<8x128xf32>
      %146 = vector.extract_strided_slice %16 {offsets = [2, 0, 0], sizes = [1, 8, 128], strides = [1, 1, 1]} : vector<6x8x128xf32> to vector<1x8x128xf32>
      %147 = vector.shape_cast %146 : vector<1x8x128xf32> to vector<8x128xf32>
      %148 = vector.extract_strided_slice %16 {offsets = [3, 0, 0], sizes = [1, 8, 128], strides = [1, 1, 1]} : vector<6x8x128xf32> to vector<1x8x128xf32>
      %149 = vector.shape_cast %148 : vector<1x8x128xf32> to vector<8x128xf32>
      %150 = vector.extract_strided_slice %16 {offsets = [4, 0, 0], sizes = [1, 8, 128], strides = [1, 1, 1]} : vector<6x8x128xf32> to vector<1x8x128xf32>
      %151 = vector.shape_cast %150 : vector<1x8x128xf32> to vector<8x128xf32>
      %cst_35 = arith.constant 5.000000e-01 : f32
      %152 = vector.broadcast %cst_35 : f32 to vector<8x128xf32>
      %153 = arith.mulf %152, %141 : vector<8x128xf32>
      %154 = arith.subf %132, %153 : vector<8x128xf32>
      %cst_36 = arith.constant 5.000000e-01 : f32
      %155 = vector.broadcast %cst_36 : f32 to vector<8x128xf32>
      %156 = arith.mulf %155, %141 : vector<8x128xf32>
      %157 = arith.addf %132, %156 : vector<8x128xf32>
      %cst_37 = arith.constant 5.000000e-01 : f32
      %158 = vector.broadcast %cst_37 : f32 to vector<8x128xf32>
      %159 = arith.mulf %158, %143 : vector<8x128xf32>
      %160 = arith.subf %139, %159 : vector<8x128xf32>
      %cst_38 = arith.constant 5.000000e-01 : f32
      %161 = vector.broadcast %cst_38 : f32 to vector<8x128xf32>
      %162 = arith.mulf %161, %143 : vector<8x128xf32>
      %163 = arith.addf %139, %162 : vector<8x128xf32>
      %cst_39 = arith.constant 5.000000e-01 : f32
      %164 = vector.broadcast %cst_39 : f32 to vector<8x128xf32>
      %165 = arith.mulf %164, %149 : vector<8x128xf32>
      %166 = arith.subf %145, %165 : vector<8x128xf32>
      %cst_40 = arith.constant 5.000000e-01 : f32
      %167 = vector.broadcast %cst_40 : f32 to vector<8x128xf32>
      %168 = arith.mulf %167, %149 : vector<8x128xf32>
      %169 = arith.addf %145, %168 : vector<8x128xf32>
      %cst_41 = arith.constant 5.000000e-01 : f32
      %170 = vector.broadcast %cst_41 : f32 to vector<8x128xf32>
      %171 = arith.mulf %170, %151 : vector<8x128xf32>
      %172 = arith.subf %147, %171 : vector<8x128xf32>
      %cst_42 = arith.constant 5.000000e-01 : f32
      %173 = vector.broadcast %cst_42 : f32 to vector<8x128xf32>
      %174 = arith.mulf %173, %151 : vector<8x128xf32>
      %175 = arith.addf %147, %174 : vector<8x128xf32>
      %176 = arith.minimumf %157, %169 : vector<8x128xf32>
      %177 = arith.maximumf %154, %166 : vector<8x128xf32>
      %178 = arith.subf %176, %177 : vector<8x128xf32>
      %cst_43 = arith.constant 0.000000e+00 : f32
      %179 = vector.broadcast %cst_43 : f32 to vector<8x128xf32>
      %180 = arith.maximumf %178, %179 : vector<8x128xf32>
      %181 = arith.minimumf %163, %175 : vector<8x128xf32>
      %182 = arith.maximumf %160, %172 : vector<8x128xf32>
      %183 = arith.subf %181, %182 : vector<8x128xf32>
      %cst_44 = arith.constant 0.000000e+00 : f32
      %184 = vector.broadcast %cst_44 : f32 to vector<8x128xf32>
      %185 = arith.maximumf %183, %184 : vector<8x128xf32>
      %186 = arith.mulf %180, %185 : vector<8x128xf32>
      %187 = arith.subf %157, %154 : vector<8x128xf32>
      %188 = arith.subf %163, %160 : vector<8x128xf32>
      %189 = arith.mulf %187, %188 : vector<8x128xf32>
      %190 = math.absf %189 : vector<8x128xf32>
      %191 = arith.subf %169, %166 : vector<8x128xf32>
      %192 = arith.subf %175, %172 : vector<8x128xf32>
      %193 = arith.mulf %191, %192 : vector<8x128xf32>
      %194 = math.absf %193 : vector<8x128xf32>
      %195 = arith.addf %190, %194 : vector<8x128xf32>
      %196 = arith.subf %195, %186 : vector<8x128xf32>
      %cst_45 = arith.constant 9.99999997E-7 : f32
      %197 = vector.broadcast %cst_45 : f32 to vector<8x128xf32>
      %198 = arith.addf %196, %197 : vector<8x128xf32>
      %199 = tpu.reciprocal %198 {approx = true} : vector<8x128xf32> -> vector<8x128xf32>
      %200 = arith.mulf %186, %199 : vector<8x128xf32>
      %201 = arith.mulf %200, %28 : vector<8x128xf32>
      %202 = arith.subf %117, %201 : vector<8x128xf32>
      %203 = arith.mulf %202, %202 : vector<8x128xf32>
      %204 = arith.subf %132, %145 : vector<8x128xf32>
      %205 = arith.mulf %204, %204 : vector<8x128xf32>
      %206 = arith.subf %139, %147 : vector<8x128xf32>
      %207 = arith.mulf %206, %206 : vector<8x128xf32>
      %208 = arith.addf %205, %207 : vector<8x128xf32>
      %209 = arith.mulf %149, %91 : vector<8x128xf32>
      %cst_46 = arith.constant 9.99999997E-7 : f32
      %210 = vector.broadcast %cst_46 : f32 to vector<8x128xf32>
      %211 = arith.addf %210, %209 : vector<8x128xf32>
      %212 = math.log %211 : vector<8x128xf32>
      %213 = arith.subf %123, %212 : vector<8x128xf32>
      %214 = arith.mulf %213, %213 : vector<8x128xf32>
      %215 = arith.addf %208, %214 : vector<8x128xf32>
      %216 = arith.mulf %151, %94 : vector<8x128xf32>
      %cst_47 = arith.constant 9.99999997E-7 : f32
      %217 = vector.broadcast %cst_47 : f32 to vector<8x128xf32>
      %218 = arith.addf %217, %216 : vector<8x128xf32>
      %219 = math.log %218 : vector<8x128xf32>
      %220 = arith.subf %125, %219 : vector<8x128xf32>
      %221 = arith.mulf %220, %220 : vector<8x128xf32>
      %222 = arith.addf %215, %221 : vector<8x128xf32>
      %223 = vector.extract_strided_slice %14 {offsets = [5, 0, 0], sizes = [4, 8, 128], strides = [1, 1, 1]} : vector<9x8x128xf32> to vector<4x8x128xf32>
      %224 = vector.extract_strided_slice %16 {offsets = [5, 0, 0], sizes = [1, 8, 128], strides = [1, 1, 1]} : vector<6x8x128xf32> to vector<1x8x128xf32>
      %225 = vector.shape_cast %224 : vector<1x8x128xf32> to vector<8x128xf32>
      %226 = arith.fptosi %225 : vector<8x128xf32> to vector<8x128xi32>
      %cst_48 = arith.constant dense<0xFF800000> : vector<8x128xf32>
      %227 = vector.multi_reduction <maximumf>, %223, %cst_48 [0] : vector<4x8x128xf32> to vector<8x128xf32>
      %228 = vector.shape_cast %227 : vector<8x128xf32> to vector<1x8x128xf32>
      %229 = vector.broadcast %228 : vector<1x8x128xf32> to vector<4x8x128xf32>
      %230 = arith.subf %223, %229 : vector<4x8x128xf32>
      %231 = math.exp %230 : vector<4x8x128xf32>
      %cst_49 = arith.constant dense<0.000000e+00> : vector<8x128xf32>
      %232 = vector.multi_reduction <add>, %231, %cst_49 [0] : vector<4x8x128xf32> to vector<8x128xf32>
      %233 = math.log %232 : vector<8x128xf32>
      %234 = arith.addf %227, %233 : vector<8x128xf32>
      %235 = tpu.iota {dimensions = array<i32: 0>} : vector<4x8x128xi32>
      %236 = vector.shape_cast %226 : vector<8x128xi32> to vector<1x8x128xi32>
      %237 = vector.broadcast %236 : vector<1x8x128xi32> to vector<4x8x128xi32>
      %238 = arith.cmpi eq, %235, %237 : vector<4x8x128xi32>
      %cst_50 = arith.constant 0.000000e+00 : f32
      %239 = vector.broadcast %cst_50 : f32 to vector<4x8x128xf32>
      %240 = arith.select %238, %223, %239 : vector<4x8x128xi1>, vector<4x8x128xf32>
      %cst_51 = arith.constant dense<0.000000e+00> : vector<8x128xf32>
      %241 = vector.multi_reduction <add>, %240, %cst_51 [0] : vector<4x8x128xf32> to vector<8x128xf32>
      %242 = arith.subf %234, %241 : vector<8x128xf32>
      %c0_52 = arith.constant 0 : index
      %c0_53 = arith.constant 0 : index
      %c0_54 = arith.constant 0 : index
      %243 = vector.load %arg6[%c0_52, %c0_53, %c0_54] : memref<6x8x128xf32, #tpu.memory_space<vmem>>, vector<1x8x128xf32>
      %244 = vector.shape_cast %243 : vector<1x8x128xf32> to vector<8x128xf32>
      %cst_55 = arith.constant 0.000000e+00 : f32
      %245 = vector.broadcast %cst_55 : f32 to vector<8x128xf32>
      %246 = arith.select %31, %222, %245 : vector<8x128xi1>, vector<8x128xf32>
      %247 = arith.addf %244, %246 : vector<8x128xf32>
      %c0_56 = arith.constant 0 : index
      %c0_57 = arith.constant 0 : index
      %c0_58 = arith.constant 0 : index
      %248 = vector.load %arg6[%c0_56, %c0_57, %c0_58] : memref<6x8x128xf32, #tpu.memory_space<vmem>>, vector<1x8x128xf32>
      %249 = vector.shape_cast %248 : vector<1x8x128xf32> to vector<8x128xf32>
      %250 = vector.shape_cast %247 : vector<8x128xf32> to vector<1x8x128xf32>
      tpu.vector_store %arg6[%c0_56, %c0_57, %c0_58], %250 {strides = array<i32>} : memref<6x8x128xf32, #tpu.memory_space<vmem>>, vector<1x8x128xf32>,
      %c1_59 = arith.constant 1 : index
      %c0_60 = arith.constant 0 : index
      %c0_61 = arith.constant 0 : index
      %251 = vector.load %arg6[%c1_59, %c0_60, %c0_61] : memref<6x8x128xf32, #tpu.memory_space<vmem>>, vector<1x8x128xf32>
      %252 = vector.shape_cast %251 : vector<1x8x128xf32> to vector<8x128xf32>
      %cst_62 = arith.constant 0.000000e+00 : f32
      %253 = vector.broadcast %cst_62 : f32 to vector<8x128xf32>
      %254 = arith.select %31, %203, %253 : vector<8x128xi1>, vector<8x128xf32>
      %255 = arith.addf %252, %254 : vector<8x128xf32>
      %c1_63 = arith.constant 1 : index
      %c0_64 = arith.constant 0 : index
      %c0_65 = arith.constant 0 : index
      %256 = vector.load %arg6[%c1_63, %c0_64, %c0_65] : memref<6x8x128xf32, #tpu.memory_space<vmem>>, vector<1x8x128xf32>
      %257 = vector.shape_cast %256 : vector<1x8x128xf32> to vector<8x128xf32>
      %258 = vector.shape_cast %255 : vector<8x128xf32> to vector<1x8x128xf32>
      tpu.vector_store %arg6[%c1_63, %c0_64, %c0_65], %258 {strides = array<i32>} : memref<6x8x128xf32, #tpu.memory_space<vmem>>, vector<1x8x128xf32>,
      %c2_66 = arith.constant 2 : index
      %c0_67 = arith.constant 0 : index
      %c0_68 = arith.constant 0 : index
      %259 = vector.load %arg6[%c2_66, %c0_67, %c0_68] : memref<6x8x128xf32, #tpu.memory_space<vmem>>, vector<1x8x128xf32>
      %260 = vector.shape_cast %259 : vector<1x8x128xf32> to vector<8x128xf32>
      %cst_69 = arith.constant 0.000000e+00 : f32
      %261 = vector.broadcast %cst_69 : f32 to vector<8x128xf32>
      %262 = arith.select %34, %108, %261 : vector<8x128xi1>, vector<8x128xf32>
      %263 = arith.addf %260, %262 : vector<8x128xf32>
      %c2_70 = arith.constant 2 : index
      %c0_71 = arith.constant 0 : index
      %c0_72 = arith.constant 0 : index
      %264 = vector.load %arg6[%c2_70, %c0_71, %c0_72] : memref<6x8x128xf32, #tpu.memory_space<vmem>>, vector<1x8x128xf32>
      %265 = vector.shape_cast %264 : vector<1x8x128xf32> to vector<8x128xf32>
      %266 = vector.shape_cast %263 : vector<8x128xf32> to vector<1x8x128xf32>
      tpu.vector_store %arg6[%c2_70, %c0_71, %c0_72], %266 {strides = array<i32>} : memref<6x8x128xf32, #tpu.memory_space<vmem>>, vector<1x8x128xf32>,
      %c3_73 = arith.constant 3 : index
      %c0_74 = arith.constant 0 : index
      %c0_75 = arith.constant 0 : index
      %267 = vector.load %arg6[%c3_73, %c0_74, %c0_75] : memref<6x8x128xf32, #tpu.memory_space<vmem>>, vector<1x8x128xf32>
      %268 = vector.shape_cast %267 : vector<1x8x128xf32> to vector<8x128xf32>
      %cst_76 = arith.constant 0.000000e+00 : f32
      %269 = vector.broadcast %cst_76 : f32 to vector<8x128xf32>
      %270 = arith.select %31, %242, %269 : vector<8x128xi1>, vector<8x128xf32>
      %271 = arith.addf %268, %270 : vector<8x128xf32>
      %c3_77 = arith.constant 3 : index
      %c0_78 = arith.constant 0 : index
      %c0_79 = arith.constant 0 : index
      %272 = vector.load %arg6[%c3_77, %c0_78, %c0_79] : memref<6x8x128xf32, #tpu.memory_space<vmem>>, vector<1x8x128xf32>
      %273 = vector.shape_cast %272 : vector<1x8x128xf32> to vector<8x128xf32>
      %274 = vector.shape_cast %271 : vector<8x128xf32> to vector<1x8x128xf32>
      tpu.vector_store %arg6[%c3_77, %c0_78, %c0_79], %274 {strides = array<i32>} : memref<6x8x128xf32, #tpu.memory_space<vmem>>, vector<1x8x128xf32>,
      %c4_80 = arith.constant 4 : index
      %c0_81 = arith.constant 0 : index
      %c0_82 = arith.constant 0 : index
      %275 = vector.load %arg6[%c4_80, %c0_81, %c0_82] : memref<6x8x128xf32, #tpu.memory_space<vmem>>, vector<1x8x128xf32>
      %276 = vector.shape_cast %275 : vector<1x8x128xf32> to vector<8x128xf32>
      %277 = arith.extui %31 : vector<8x128xi1> to vector<8x128xi32>
      %278 = arith.sitofp %277 : vector<8x128xi32> to vector<8x128xf32>
      %279 = arith.addf %276, %278 : vector<8x128xf32>
      %c4_83 = arith.constant 4 : index
      %c0_84 = arith.constant 0 : index
      %c0_85 = arith.constant 0 : index
      %280 = vector.load %arg6[%c4_83, %c0_84, %c0_85] : memref<6x8x128xf32, #tpu.memory_space<vmem>>, vector<1x8x128xf32>
      %281 = vector.shape_cast %280 : vector<1x8x128xf32> to vector<8x128xf32>
      %282 = vector.shape_cast %279 : vector<8x128xf32> to vector<1x8x128xf32>
      tpu.vector_store %arg6[%c4_83, %c0_84, %c0_85], %282 {strides = array<i32>} : memref<6x8x128xf32, #tpu.memory_space<vmem>>, vector<1x8x128xf32>,
      %c5_86 = arith.constant 5 : index
      %c0_87 = arith.constant 0 : index
      %c0_88 = arith.constant 0 : index
      %283 = vector.load %arg6[%c5_86, %c0_87, %c0_88] : memref<6x8x128xf32, #tpu.memory_space<vmem>>, vector<1x8x128xf32>
      %284 = vector.shape_cast %283 : vector<1x8x128xf32> to vector<8x128xf32>
      %285 = arith.extui %34 : vector<8x128xi1> to vector<8x128xi32>
      %286 = arith.sitofp %285 : vector<8x128xi32> to vector<8x128xf32>
      %287 = arith.addf %284, %286 : vector<8x128xf32>
      %c5_89 = arith.constant 5 : index
      %c0_90 = arith.constant 0 : index
      %c0_91 = arith.constant 0 : index
      %288 = vector.load %arg6[%c5_89, %c0_90, %c0_91] : memref<6x8x128xf32, #tpu.memory_space<vmem>>, vector<1x8x128xf32>
      %289 = vector.shape_cast %288 : vector<1x8x128xf32> to vector<8x128xf32>
      %290 = vector.shape_cast %287 : vector<8x128xf32> to vector<1x8x128xf32>
      tpu.vector_store %arg6[%c5_89, %c0_90, %c0_91], %290 {strides = array<i32>} : memref<6x8x128xf32, #tpu.memory_space<vmem>>, vector<1x8x128xf32>,
    } else {
    }
    %c0_i32_3 = arith.constant 0 : i32
    %8 = arith.cmpi eq, %arg1, %c0_i32_3 : i32
    %9 = arith.extui %8 : i1 to i32
    %c0_i32_4 = arith.constant 0 : i32
    %10 = arith.cmpi ne, %9, %c0_i32_4 : i32
    scf.if %10 {
      %c0 = arith.constant 0 : index
      %c0_5 = arith.constant 0 : index
      %c0_6 = arith.constant 0 : index
      %11 = vector.load %arg6[%c0, %c0_5, %c0_6] : memref<6x8x128xf32, #tpu.memory_space<vmem>>, vector<6x8x128xf32>
      %c0_7 = arith.constant 0 : index
      %c0_8 = arith.constant 0 : index
      %c0_9 = arith.constant 0 : index
      %c0_10 = arith.constant 0 : index
      %12 = vector.load %arg5[%c0_7, %c0_8, %c0_9, %c0_10] : memref<1x6x8x128xf32, #tpu.memory_space<vmem>>, vector<1x6x8x128xf32>
      %13 = vector.shape_cast %12 : vector<1x6x8x128xf32> to vector<6x8x128xf32>
      %14 = vector.shape_cast %11 : vector<6x8x128xf32> to vector<1x6x8x128xf32>
      tpu.vector_store %arg5[%c0_7, %c0_8, %c0_9, %c0_10], %14 {strides = array<i32>} : memref<1x6x8x128xf32, #tpu.memory_space<vmem>>, vector<1x6x8x128xf32>,
    } else {
    }
    return
  }
  func.func @transform_0(%arg0: i32, %arg1: i32) -> i32 {
    %c0_i32 = arith.constant 0 : i32
    %c0_i32_0 = arith.constant 0 : i32
    return %c0_i32 : i32
  }
  func.func @transform_1(%arg0: i32, %arg1: i32) -> (i32, i32) {
    %c1_i32 = arith.constant 1 : i32
    %0 = arith.muli %arg0, %c1_i32 : i32
    %1 = arith.addi %0, %arg1 : i32
    %c0_i32 = arith.constant 0 : i32
    %2 = arith.minsi %1, %c0_i32 : i32
    %c0_i32_0 = arith.constant 0 : i32
    %c0_i32_1 = arith.constant 0 : i32
    return %2, %c0_i32_0 : i32, i32
  }
  func.func @transform_2(%arg0: i32, %arg1: i32) -> (i32, i32) {
    %c1_i32 = arith.constant 1 : i32
    %0 = arith.muli %arg0, %c1_i32 : i32
    %1 = arith.addi %0, %arg1 : i32
    %c0_i32 = arith.constant 0 : i32
    %2 = arith.minsi %1, %c0_i32 : i32
    %c0_i32_0 = arith.constant 0 : i32
    %c0_i32_1 = arith.constant 0 : i32
    return %2, %c0_i32_0 : i32, i32
  }
  func.func @transform_3(%arg0: i32, %arg1: i32) -> (i32, i32, i32, i32) {
    %c0_i32 = arith.constant 0 : i32
    %c0_i32_0 = arith.constant 0 : i32
    %c0_i32_1 = arith.constant 0 : i32
    %c0_i32_2 = arith.constant 0 : i32
    return %arg0, %c0_i32, %c0_i32_0, %c0_i32_1 : i32, i32, i32, i32
  }
}

</mosaic_0001>

<llo_original>
// kernel: tpu_custom_call.1
$region0: #{tpu_custom_call.1}
  #allocation0 [shape = 'u32[]', space=smem, size = 0x4, offset = 0x4, fixed_abs, tag = 'smem constant byte address 0x4 - core index']
  #allocation1 [shape = 'u32[144,128]{1,0:T(1,128)}', space=vmem, size = 0x12000, scoped, tag = 'internal scratch']
  #allocation2 [shape = 'f32[6,8,128]{2,1,0:T(8,128)}', space=vmem, size = 0x6000, scoped, tag = 'scratch operand']
  %s0 = inlined_call_operand.vmem [shape: f32[12], index: 0, kind: input, shape index: {}]
  %s1 = inlined_call_operand.vmem [shape: f32[1014,9], index: 1, kind: input, shape index: {}]
  %s2 = inlined_call_operand.vmem [shape: f32[1014,6], index: 2, kind: input, shape index: {}]
  %s3 = inlined_call_operand.hbm [shape: f32[1,6,8,128], index: 3, kind: output, shape index: {}]
  %s4 = sld [smem:[#allocation0]]
  $region38: #{tpu_custom_call.1} parent=0
    _
  %s6 = ssub.s32 1, %s4
  %s7 = scalar_select 0, %s6, %s4
  $region1: #{tpu_custom_call.1} parent=0
    #allocation3 [shape = 'u8[512]{0}', space=smem, size = 0x200, scoped, tag = 'input window, operand 0, single buffered']
    #allocation4 [shape = 's32[1]{0}', space=sflag, size = 0x4, scoped, tag = 'scoped memory for tpu_custom_call.1']
    #allocation5 [shape = 's32[1]{0}', space=sflag, size = 0x4, scoped, tag = 'scoped memory for tpu_custom_call.1']
    #allocation6 [shape = 'u8[24576]{0}', space=vmem, size = 0x6000, scoped, tag = 'output window, operand 0, single buffered']
    %8 = vsyncpa [#allocation5], 0
    %9 = vsyncpa [#allocation4], 0
    // Predicated region
    $region2: #{tpu_custom_call.1} parent=1 // pred_check
      _
    $region3: #{tpu_custom_call.1} parent=1 // pred_check_branch
      %11 = sbr.rel (0) target = $region5
    $region4: #{tpu_custom_call.1} parent=1 // pred_region
      %s13 = ssub.s32 16, 16
      %14 = vsyncadd [#allocation5], %s13
      %s16 = sshll.u32 %s0, 4
      %s17 = int_to_ptr.vmem [resolvable:$true] %s16
      %19 = dma.vmem_to_smem %s17, 16, [#allocation3], [#allocation5]
    $region5: #{tpu_custom_call.1} parent=1 // pred_fallthru
      _
    // Predicated region
    $region6: #{tpu_custom_call.1} parent=1 // pred_check
      _
    $region7: #{tpu_custom_call.1} parent=1 // pred_check_branch
      %21 = sbr.rel (0) target = $region9
    $region8: #{tpu_custom_call.1} parent=1 // pred_region
      %s22 = sadd.s32 0, 0
      %p23 = scmp.lt.s32.totalorder %s22, 0
      %s24 = scalar_select %p23, %s22, 0
      %s25 = smul.u32 128, %s24
      %s26 = ssub.s32 127, %s25
      %s27 = smul.u32 128, %s26
      %p28 = scmp.lt.s32.totalorder %s25, 126
      %s29 = scalar_select %p28, %s25, 126
      %s30 = smul.addr %s29, 8
      %s31 = scalar_lea.vmem %s1, %s30
      %s32 = sadd.s32 0, 0
      %p33 = scmp.lt.s32.totalorder %s32, 0
      %s34 = scalar_select %p33, %s32, 0
      %s35 = smul.u32 128, %s34
      %s36 = ssub.s32 127, %s35
      %s37 = smul.u32 128, %s36
    $region9: #{tpu_custom_call.1} parent=1 // pred_fallthru
      _
    // Predicated region
    $region10: #{tpu_custom_call.1} parent=1 // pred_check
      _
    $region11: #{tpu_custom_call.1} parent=1 // pred_check_branch
      %39 = sbr.rel (0) target = $region13
    $region12: #{tpu_custom_call.1} parent=1 // pred_region
      %s40 = sadd.s32 0, 0
      %p41 = scmp.lt.s32.totalorder %s40, 0
      %s42 = scalar_select %p41, %s40, 0
      %s43 = smul.u32 128, %s42
      %s44 = ssub.s32 127, %s43
      %s45 = smul.u32 128, %s44
      %p46 = scmp.lt.s32.totalorder %s43, 126
      %s47 = scalar_select %p46, %s43, 126
      %s48 = smul.addr %s47, 8
      %s49 = scalar_lea.vmem %s2, %s48
      %s50 = sadd.s32 0, 0
      %p51 = scmp.lt.s32.totalorder %s50, 0
      %s52 = scalar_select %p51, %s50, 0
      %s53 = smul.u32 128, %s52
      %s54 = ssub.s32 127, %s53
      %s55 = smul.u32 128, %s54
    $region13: #{tpu_custom_call.1} parent=1 // pred_fallthru
      _
    // Predicated region
    $region14: #{tpu_custom_call.1} parent=1 // pred_check
      _
    $region15: #{tpu_custom_call.1} parent=1 // pred_check_branch
      %57 = sbr.rel (0) target = $region17
    $region16: #{tpu_custom_call.1} parent=1 // pred_region
      %58 = dma.done [#allocation5], 16
    $region17: #{tpu_custom_call.1} parent=1 // pred_fallthru
      _
    %59 = sfence
    %s60 = sadd.s32 0, 0
    %p61 = scmp.lt.s32.totalorder %s60, 0
    %s62 = scalar_select %p61, %s60, 0
    %s63 = smul.u32 128, %s62
    %s64 = ssub.s32 127, %s63
    %s65 = smul.u32 128, %s64
    %p66 = scmp.lt.s32.totalorder %s63, 126
    %s67 = scalar_select %p66, %s63, 126
    %s68 = smul.addr %s67, 8
    %s69 = scalar_lea.vmem %s1, %s68
    %s70 = sadd.s32 0, 0
    %p71 = scmp.lt.s32.totalorder %s70, 0
    %s72 = scalar_select %p71, %s70, 0
    %s73 = smul.u32 128, %s72
    %s74 = ssub.s32 127, %s73
    %s75 = smul.u32 128, %s74
    %p76 = scmp.lt.s32.totalorder %s73, 126
    %s77 = scalar_select %p76, %s73, 126
    %s78 = smul.addr %s77, 8
    %s79 = scalar_lea.vmem %s2, %s78
    %s80 = sadd.s32 0, 0
    %p81 = scmp.lt.s32.totalorder %s80, 0
    %s82 = scalar_select %p81, %s80, 0
    %s83 = smul.u32 128, %s82
    %s84 = ssub.s32 127, %s83
    %s85 = smul.u32 128, %s84
    %p86 = scmp.lt.s32.totalorder %s83, 126
    %s87 = scalar_select %p86, %s83, 126
    %s88 = smul.addr %s87, 8
    %s89 = scalar_lea.vmem %s1, %s88
    %s90 = sadd.s32 0, 0
    %p91 = scmp.lt.s32.totalorder %s90, 0
    %s92 = scalar_select %p91, %s90, 0
    %s93 = smul.u32 128, %s92
    %s94 = ssub.s32 127, %s93
    %s95 = smul.u32 128, %s94
    %s96 = sadd.s32 0, 0
    %p97 = scmp.lt.s32.totalorder %s96, 0
    %s98 = scalar_select %p97, %s96, 0
    %s99 = smul.u32 128, %s98
    %s100 = ssub.s32 127, %s99
    %s101 = smul.u32 128, %s100
    %p102 = scmp.lt.s32.totalorder %s99, 126
    %s103 = scalar_select %p102, %s99, 126
    %s104 = smul.addr %s103, 8
    %s105 = scalar_lea.vmem %s2, %s104
    %s106 = sadd.s32 0, 0
    %p107 = scmp.lt.s32.totalorder %s106, 0
    %s108 = scalar_select %p107, %s106, 0
    %s109 = smul.u32 128, %s108
    %s110 = ssub.s32 127, %s109
    %s111 = smul.u32 128, %s110
    %p112 = scmp.eq.s32.totalorder 0, 0
    // Predicated region
    $region18: #{tpu_custom_call.1} parent=1 // pred_check
      %p113 = pneg %p112
    $region19: #{tpu_custom_call.1} parent=1 // pred_check_branch
      %115 = sbr.rel (%p113) target = $region21
    $region20: #{tpu_custom_call.1} parent=1 // pred_region
      %116 = vst [vmem:[#allocation2] sm:$0xff] 0.0
      %117 = vst [vmem:[#allocation2 + $0x8] sm:$0xff] 0.0
      %118 = vst [vmem:[#allocation2 + $0x10] sm:$0xff] 0.0
      %119 = vst [vmem:[#allocation2 + $0x18] sm:$0xff] 0.0
      %120 = vst [vmem:[#allocation2 + $0x20] sm:$0xff] 0.0
      %121 = vst [vmem:[#allocation2 + $0x28] sm:$0xff] 0.0
    $region21: #{tpu_custom_call.1} parent=1 // pred_fallthru
      _
    %s122 = sadd.s32 0, 0
    %p123 = scmp.lt.s32.totalorder %s122, 1
    // Predicated region
    $region22: #{tpu_custom_call.1} parent=1 // pred_check
      %p124 = pneg %p123
    $region23: #{tpu_custom_call.1} parent=1 // pred_check_branch
      %126 = sbr.rel (%p124) target = $region25
    $region24: #{tpu_custom_call.1} parent=1 // pred_region
      %v127 = vld [vmem:[%s89] sm:$0xff]
      %v128 = vld [vmem:[%s89 + $0x8] sm:$0xff]
      %v129 = vld [vmem:[%s89 + $0x10] sm:$0xff]
      %v130 = vld [vmem:[%s89 + $0x18] sm:$0xff]
      %v131 = vld [vmem:[%s89 + $0x20] sm:$0xff]
      %v132 = vld [vmem:[%s89 + $0x28] sm:$0xff]
      %v133 = vld [vmem:[%s89 + $0x30] sm:$0xff]
      %v134 = vld [vmem:[%s89 + $0x38] sm:$0xff]
      %v135 = vld [vmem:[%s89 + $0x40] sm:$0xff]
      %v136 = vld [vmem:[%s89 + $0x48] sm:$0xff]
      %v137 = vld [vmem:[%s89 + $0x50] sm:$0xff]
      %v138 = vld [vmem:[%s89 + $0x58] sm:$0xff]
      %v139 = vld [vmem:[%s89 + $0x60] sm:$0xff]
      %v140 = vld [vmem:[%s89 + $0x68] sm:$0xff]
      %v141 = vld [vmem:[%s89 + $0x70] sm:$0xff]
      %v142 = vld [vmem:[%s89 + $0x78] sm:$0xff]
      %v143 = vld [vmem:[%s89 + $0x80] sm:$0xff]
      %v144 = vld [vmem:[%s89 + $0x88] sm:$0xff]
      %v145 = vld [vmem:[%s89 + $0x90] sm:$0xff]
      %v146 = vld [vmem:[%s89 + $0x98] sm:$0xff]
      %v147 = vld [vmem:[%s89 + $0xa0] sm:$0xff]
      %v148 = vld [vmem:[%s89 + $0xa8] sm:$0xff]
      %v149 = vld [vmem:[%s89 + $0xb0] sm:$0xff]
      %v150 = vld [vmem:[%s89 + $0xb8] sm:$0xff]
      %v151 = vld [vmem:[%s89 + $0xc0] sm:$0xff]
      %v152 = vld [vmem:[%s89 + $0xc8] sm:$0xff]
      %v153 = vld [vmem:[%s89 + $0xd0] sm:$0xff]
      %v154 = vld [vmem:[%s89 + $0xd8] sm:$0xff]
      %v155 = vld [vmem:[%s89 + $0xe0] sm:$0xff]
      %v156 = vld [vmem:[%s89 + $0xe8] sm:$0xff]
      %v157 = vld [vmem:[%s89 + $0xf0] sm:$0xff]
      %v158 = vld [vmem:[%s89 + $0xf8] sm:$0xff]
      %v159 = vld [vmem:[%s89 + $0x100] sm:$0xff]
      %v160 = vld [vmem:[%s89 + $0x108] sm:$0xff]
      %v161 = vld [vmem:[%s89 + $0x110] sm:$0xff]
      %v162 = vld [vmem:[%s89 + $0x118] sm:$0xff]
      %v163 = vld [vmem:[%s89 + $0x120] sm:$0xff]
      %v164 = vld [vmem:[%s89 + $0x128] sm:$0xff]
      %v165 = vld [vmem:[%s89 + $0x130] sm:$0xff]
      %v166 = vld [vmem:[%s89 + $0x138] sm:$0xff]
      %v167 = vld [vmem:[%s89 + $0x140] sm:$0xff]
      %v168 = vld [vmem:[%s89 + $0x148] sm:$0xff]
      %v169 = vld [vmem:[%s89 + $0x150] sm:$0xff]
      %v170 = vld [vmem:[%s89 + $0x158] sm:$0xff]
      %v171 = vld [vmem:[%s89 + $0x160] sm:$0xff]
      %v172 = vld [vmem:[%s89 + $0x168] sm:$0xff]
      %v173 = vld [vmem:[%s89 + $0x170] sm:$0xff]
      %v174 = vld [vmem:[%s89 + $0x178] sm:$0xff]
      %v175 = vld [vmem:[%s89 + $0x180] sm:$0xff]
      %v176 = vld [vmem:[%s89 + $0x188] sm:$0xff]
      %v177 = vld [vmem:[%s89 + $0x190] sm:$0xff]
      %v178 = vld [vmem:[%s89 + $0x198] sm:$0xff]
      %v179 = vld [vmem:[%s89 + $0x1a0] sm:$0xff]
      %v180 = vld [vmem:[%s89 + $0x1a8] sm:$0xff]
      %v181 = vld [vmem:[%s89 + $0x1b0] sm:$0xff]
      %v182 = vld [vmem:[%s89 + $0x1b8] sm:$0xff]
      %v183 = vld [vmem:[%s89 + $0x1c0] sm:$0xff]
      %v184 = vld [vmem:[%s89 + $0x1c8] sm:$0xff]
      %v185 = vld [vmem:[%s89 + $0x1d0] sm:$0xff]
      %v186 = vld [vmem:[%s89 + $0x1d8] sm:$0xff]
      %v187 = vld [vmem:[%s89 + $0x1e0] sm:$0xff]
      %v188 = vld [vmem:[%s89 + $0x1e8] sm:$0xff]
      %v189 = vld [vmem:[%s89 + $0x1f0] sm:$0xff]
      %v190 = vld [vmem:[%s89 + $0x1f8] sm:$0xff]
      %v191 = vld [vmem:[%s89 + $0x200] sm:$0xff]
      %v192 = vld [vmem:[%s89 + $0x208] sm:$0xff]
      %v193 = vld [vmem:[%s89 + $0x210] sm:$0xff]
      %v194 = vld [vmem:[%s89 + $0x218] sm:$0xff]
      %v195 = vld [vmem:[%s89 + $0x220] sm:$0xff]
      %v196 = vld [vmem:[%s89 + $0x228] sm:$0xff]
      %v197 = vld [vmem:[%s89 + $0x230] sm:$0xff]
      %v198 = vld [vmem:[%s89 + $0x238] sm:$0xff]
      %v199 = vld [vmem:[%s89 + $0x240] sm:$0xff]
      %v200 = vld [vmem:[%s89 + $0x248] sm:$0xff]
      %v201 = vld [vmem:[%s89 + $0x250] sm:$0xff]
      %v202 = vld [vmem:[%s89 + $0x258] sm:$0xff]
      %v203 = vld [vmem:[%s89 + $0x260] sm:$0xff]
      %v204 = vld [vmem:[%s89 + $0x268] sm:$0xff]
      %v205 = vld [vmem:[%s89 + $0x270] sm:$0xff]
      %v206 = vld [vmem:[%s89 + $0x278] sm:$0xff]
      %v207 = vld [vmem:[%s89 + $0x280] sm:$0xff]
      %v208 = vld [vmem:[%s89 + $0x288] sm:$0xff]
      %v209 = vld [vmem:[%s89 + $0x290] sm:$0xff]
      %v210 = vld [vmem:[%s89 + $0x298] sm:$0xff]
      %v211 = vld [vmem:[%s89 + $0x2a0] sm:$0xff]
      %v212 = vld [vmem:[%s89 + $0x2a8] sm:$0xff]
      %v213 = vld [vmem:[%s89 + $0x2b0] sm:$0xff]
      %v214 = vld [vmem:[%s89 + $0x2b8] sm:$0xff]
      %v215 = vld [vmem:[%s89 + $0x2c0] sm:$0xff]
      %v216 = vld [vmem:[%s89 + $0x2c8] sm:$0xff]
      %v217 = vld [vmem:[%s89 + $0x2d0] sm:$0xff]
      %v218 = vld [vmem:[%s89 + $0x2d8] sm:$0xff]
      %v219 = vld [vmem:[%s89 + $0x2e0] sm:$0xff]
      %v220 = vld [vmem:[%s89 + $0x2e8] sm:$0xff]
      %v221 = vld [vmem:[%s89 + $0x2f0] sm:$0xff]
      %v222 = vld [vmem:[%s89 + $0x2f8] sm:$0xff]
      %v223 = vld [vmem:[%s89 + $0x300] sm:$0xff]
      %v224 = vld [vmem:[%s89 + $0x308] sm:$0xff]
      %v225 = vld [vmem:[%s89 + $0x310] sm:$0xff]
      %v226 = vld [vmem:[%s89 + $0x318] sm:$0xff]
      %v227 = vld [vmem:[%s89 + $0x320] sm:$0xff]
      %v228 = vld [vmem:[%s89 + $0x328] sm:$0xff]
      %v229 = vld [vmem:[%s89 + $0x330] sm:$0xff]
      %v230 = vld [vmem:[%s89 + $0x338] sm:$0xff]
      %v231 = vld [vmem:[%s89 + $0x340] sm:$0xff]
      %v232 = vld [vmem:[%s89 + $0x348] sm:$0xff]
      %v233 = vld [vmem:[%s89 + $0x350] sm:$0xff]
      %v234 = vld [vmem:[%s89 + $0x358] sm:$0xff]
      %v235 = vld [vmem:[%s89 + $0x360] sm:$0xff]
      %v236 = vld [vmem:[%s89 + $0x368] sm:$0xff]
      %v237 = vld [vmem:[%s89 + $0x370] sm:$0xff]
      %v238 = vld [vmem:[%s89 + $0x378] sm:$0xff]
      %v239 = vld [vmem:[%s89 + $0x380] sm:$0xff]
      %v240 = vld [vmem:[%s89 + $0x388] sm:$0xff]
      %v241 = vld [vmem:[%s89 + $0x390] sm:$0xff]
      %v242 = vld [vmem:[%s89 + $0x398] sm:$0xff]
      %v243 = vld [vmem:[%s89 + $0x3a0] sm:$0xff]
      %v244 = vld [vmem:[%s89 + $0x3a8] sm:$0xff]
      %v245 = vld [vmem:[%s89 + $0x3b0] sm:$0xff]
      %v246 = vld [vmem:[%s89 + $0x3b8] sm:$0xff]
      %v247 = vld [vmem:[%s89 + $0x3c0] sm:$0xff]
      %v248 = vld [vmem:[%s89 + $0x3c8] sm:$0xff]
      %v249 = vld [vmem:[%s89 + $0x3d0] sm:$0xff]
      %v250 = vld [vmem:[%s89 + $0x3d8] sm:$0xff]
      %v251 = vld [vmem:[%s89 + $0x3e0] sm:$0xff]
      %v252 = vld [vmem:[%s89 + $0x3e8] sm:$0xff]
      %v253 = vld [vmem:[%s89 + $0x3f0] sm:$0xff]
      %v254 = vld [vmem:[%s89 + $0x3f8] sm:$0xff]
      %v255 = vld [vmem:[%s105] sm:$0xff]
      %v256 = vld [vmem:[%s105 + $0x8] sm:$0xff]
      %v257 = vld [vmem:[%s105 + $0x10] sm:$0xff]
      %v258 = vld [vmem:[%s105 + $0x18] sm:$0xff]
      %v259 = vld [vmem:[%s105 + $0x20] sm:$0xff]
      %v260 = vld [vmem:[%s105 + $0x28] sm:$0xff]
      %v261 = vld [vmem:[%s105 + $0x30] sm:$0xff]
      %v262 = vld [vmem:[%s105 + $0x38] sm:$0xff]
      %v263 = vld [vmem:[%s105 + $0x40] sm:$0xff]
      %v264 = vld [vmem:[%s105 + $0x48] sm:$0xff]
      %v265 = vld [vmem:[%s105 + $0x50] sm:$0xff]
      %v266 = vld [vmem:[%s105 + $0x58] sm:$0xff]
      %v267 = vld [vmem:[%s105 + $0x60] sm:$0xff]
      %v268 = vld [vmem:[%s105 + $0x68] sm:$0xff]
      %v269 = vld [vmem:[%s105 + $0x70] sm:$0xff]
      %v270 = vld [vmem:[%s105 + $0x78] sm:$0xff]
      %v271 = vld [vmem:[%s105 + $0x80] sm:$0xff]
      %v272 = vld [vmem:[%s105 + $0x88] sm:$0xff]
      %v273 = vld [vmem:[%s105 + $0x90] sm:$0xff]
      %v274 = vld [vmem:[%s105 + $0x98] sm:$0xff]
      %v275 = vld [vmem:[%s105 + $0xa0] sm:$0xff]
      %v276 = vld [vmem:[%s105 + $0xa8] sm:$0xff]
      %v277 = vld [vmem:[%s105 + $0xb0] sm:$0xff]
      %v278 = vld [vmem:[%s105 + $0xb8] sm:$0xff]
      %v279 = vld [vmem:[%s105 + $0xc0] sm:$0xff]
      %v280 = vld [vmem:[%s105 + $0xc8] sm:$0xff]
      %v281 = vld [vmem:[%s105 + $0xd0] sm:$0xff]
      %v282 = vld [vmem:[%s105 + $0xd8] sm:$0xff]
      %v283 = vld [vmem:[%s105 + $0xe0] sm:$0xff]
      %v284 = vld [vmem:[%s105 + $0xe8] sm:$0xff]
      %v285 = vld [vmem:[%s105 + $0xf0] sm:$0xff]
      %v286 = vld [vmem:[%s105 + $0xf8] sm:$0xff]
      %v287 = vld [vmem:[%s105 + $0x100] sm:$0xff]
      %v288 = vld [vmem:[%s105 + $0x108] sm:$0xff]
      %v289 = vld [vmem:[%s105 + $0x110] sm:$0xff]
      %v290 = vld [vmem:[%s105 + $0x118] sm:$0xff]
      %v291 = vld [vmem:[%s105 + $0x120] sm:$0xff]
      %v292 = vld [vmem:[%s105 + $0x128] sm:$0xff]
      %v293 = vld [vmem:[%s105 + $0x130] sm:$0xff]
      %v294 = vld [vmem:[%s105 + $0x138] sm:$0xff]
      %v295 = vld [vmem:[%s105 + $0x140] sm:$0xff]
      %v296 = vld [vmem:[%s105 + $0x148] sm:$0xff]
      %v297 = vld [vmem:[%s105 + $0x150] sm:$0xff]
      %v298 = vld [vmem:[%s105 + $0x158] sm:$0xff]
      %v299 = vld [vmem:[%s105 + $0x160] sm:$0xff]
      %v300 = vld [vmem:[%s105 + $0x168] sm:$0xff]
      %v301 = vld [vmem:[%s105 + $0x170] sm:$0xff]
      %v302 = vld [vmem:[%s105 + $0x178] sm:$0xff]
      %v303 = vld [vmem:[%s105 + $0x180] sm:$0xff]
      %v304 = vld [vmem:[%s105 + $0x188] sm:$0xff]
      %v305 = vld [vmem:[%s105 + $0x190] sm:$0xff]
      %v306 = vld [vmem:[%s105 + $0x198] sm:$0xff]
      %v307 = vld [vmem:[%s105 + $0x1a0] sm:$0xff]
      %v308 = vld [vmem:[%s105 + $0x1a8] sm:$0xff]
      %v309 = vld [vmem:[%s105 + $0x1b0] sm:$0xff]
      %v310 = vld [vmem:[%s105 + $0x1b8] sm:$0xff]
      %v311 = vld [vmem:[%s105 + $0x1c0] sm:$0xff]
      %v312 = vld [vmem:[%s105 + $0x1c8] sm:$0xff]
      %v313 = vld [vmem:[%s105 + $0x1d0] sm:$0xff]
      %v314 = vld [vmem:[%s105 + $0x1d8] sm:$0xff]
      %v315 = vld [vmem:[%s105 + $0x1e0] sm:$0xff]
      %v316 = vld [vmem:[%s105 + $0x1e8] sm:$0xff]
      %v317 = vld [vmem:[%s105 + $0x1f0] sm:$0xff]
      %v318 = vld [vmem:[%s105 + $0x1f8] sm:$0xff]
      %v319 = vld [vmem:[%s105 + $0x200] sm:$0xff]
      %v320 = vld [vmem:[%s105 + $0x208] sm:$0xff]
      %v321 = vld [vmem:[%s105 + $0x210] sm:$0xff]
      %v322 = vld [vmem:[%s105 + $0x218] sm:$0xff]
      %v323 = vld [vmem:[%s105 + $0x220] sm:$0xff]
      %v324 = vld [vmem:[%s105 + $0x228] sm:$0xff]
      %v325 = vld [vmem:[%s105 + $0x230] sm:$0xff]
      %v326 = vld [vmem:[%s105 + $0x238] sm:$0xff]
      %v327 = vld [vmem:[%s105 + $0x240] sm:$0xff]
      %v328 = vld [vmem:[%s105 + $0x248] sm:$0xff]
      %v329 = vld [vmem:[%s105 + $0x250] sm:$0xff]
      %v330 = vld [vmem:[%s105 + $0x258] sm:$0xff]
      %v331 = vld [vmem:[%s105 + $0x260] sm:$0xff]
      %v332 = vld [vmem:[%s105 + $0x268] sm:$0xff]
      %v333 = vld [vmem:[%s105 + $0x270] sm:$0xff]
      %v334 = vld [vmem:[%s105 + $0x278] sm:$0xff]
      %v335 = vld [vmem:[%s105 + $0x280] sm:$0xff]
      %v336 = vld [vmem:[%s105 + $0x288] sm:$0xff]
      %v337 = vld [vmem:[%s105 + $0x290] sm:$0xff]
      %v338 = vld [vmem:[%s105 + $0x298] sm:$0xff]
      %v339 = vld [vmem:[%s105 + $0x2a0] sm:$0xff]
      %v340 = vld [vmem:[%s105 + $0x2a8] sm:$0xff]
      %v341 = vld [vmem:[%s105 + $0x2b0] sm:$0xff]
      %v342 = vld [vmem:[%s105 + $0x2b8] sm:$0xff]
      %v343 = vld [vmem:[%s105 + $0x2c0] sm:$0xff]
      %v344 = vld [vmem:[%s105 + $0x2c8] sm:$0xff]
      %v345 = vld [vmem:[%s105 + $0x2d0] sm:$0xff]
      %v346 = vld [vmem:[%s105 + $0x2d8] sm:$0xff]
      %v347 = vld [vmem:[%s105 + $0x2e0] sm:$0xff]
      %v348 = vld [vmem:[%s105 + $0x2e8] sm:$0xff]
      %v349 = vld [vmem:[%s105 + $0x2f0] sm:$0xff]
      %v350 = vld [vmem:[%s105 + $0x2f8] sm:$0xff]
      %v351 = vld [vmem:[%s105 + $0x300] sm:$0xff]
      %v352 = vld [vmem:[%s105 + $0x308] sm:$0xff]
      %v353 = vld [vmem:[%s105 + $0x310] sm:$0xff]
      %v354 = vld [vmem:[%s105 + $0x318] sm:$0xff]
      %v355 = vld [vmem:[%s105 + $0x320] sm:$0xff]
      %v356 = vld [vmem:[%s105 + $0x328] sm:$0xff]
      %v357 = vld [vmem:[%s105 + $0x330] sm:$0xff]
      %v358 = vld [vmem:[%s105 + $0x338] sm:$0xff]
      %v359 = vld [vmem:[%s105 + $0x340] sm:$0xff]
      %v360 = vld [vmem:[%s105 + $0x348] sm:$0xff]
      %v361 = vld [vmem:[%s105 + $0x350] sm:$0xff]
      %v362 = vld [vmem:[%s105 + $0x358] sm:$0xff]
      %v363 = vld [vmem:[%s105 + $0x360] sm:$0xff]
      %v364 = vld [vmem:[%s105 + $0x368] sm:$0xff]
      %v365 = vld [vmem:[%s105 + $0x370] sm:$0xff]
      %v366 = vld [vmem:[%s105 + $0x378] sm:$0xff]
      %v367 = vld [vmem:[%s105 + $0x380] sm:$0xff]
      %v368 = vld [vmem:[%s105 + $0x388] sm:$0xff]
      %v369 = vld [vmem:[%s105 + $0x390] sm:$0xff]
      %v370 = vld [vmem:[%s105 + $0x398] sm:$0xff]
      %v371 = vld [vmem:[%s105 + $0x3a0] sm:$0xff]
      %v372 = vld [vmem:[%s105 + $0x3a8] sm:$0xff]
      %v373 = vld [vmem:[%s105 + $0x3b0] sm:$0xff]
      %v374 = vld [vmem:[%s105 + $0x3b8] sm:$0xff]
      %v375 = vld [vmem:[%s105 + $0x3c0] sm:$0xff]
      %v376 = vld [vmem:[%s105 + $0x3c8] sm:$0xff]
      %v377 = vld [vmem:[%s105 + $0x3d0] sm:$0xff]
      %v378 = vld [vmem:[%s105 + $0x3d8] sm:$0xff]
      %v379 = vld [vmem:[%s105 + $0x3e0] sm:$0xff]
      %v380 = vld [vmem:[%s105 + $0x3e8] sm:$0xff]
      %v381 = vld [vmem:[%s105 + $0x3f0] sm:$0xff]
      %v382 = vld [vmem:[%s105 + $0x3f8] sm:$0xff]
      %383 = vxpose.xlu0.b32.start [1/16] %v127, 128
      %384 = vxpose.xlu0.b32.cont [2/16] %v128, 128
      %385 = vxpose.xlu0.b32.cont [3/16] %v129, 128
      %386 = vxpose.xlu0.b32.cont [4/16] %v130, 128
      %387 = vxpose.xlu0.b32.cont [5/16] %v131, 128
      %388 = vxpose.xlu0.b32.cont [6/16] %v132, 128
      %389 = vxpose.xlu0.b32.cont [7/16] %v133, 128
      %390 = vxpose.xlu0.b32.cont [8/16] %v134, 128
      %391 = vxpose.xlu0.b32.cont [9/16] %v135, 128
      %392 = vxpose.xlu0.b32.cont [10/16] %v136, 128
      %393 = vxpose.xlu0.b32.cont [11/16] %v137, 128
      %394 = vxpose.xlu0.b32.cont [12/16] %v138, 128
      %395 = vxpose.xlu0.b32.cont [13/16] %v139, 128
      %396 = vxpose.xlu0.b32.cont [14/16] %v140, 128
      %397 = vxpose.xlu0.b32.cont [15/16] %v141, 128
      %398 = vxpose.xlu0.b32.end [16/16] %v142, 128
      %v399 = vpop.trf.xlu0
      %v400 = vpop.trf.xlu0
      %v401 = vpop.trf.xlu0
      %v402 = vpop.trf.xlu0
      %v403 = vpop.trf.xlu0
      %v404 = vpop.trf.xlu0
      %v405 = vpop.trf.xlu0
      %v406 = vpop.trf.xlu0
      %v407 = vpop.trf.xlu0
      %v408 = vpop.trf.xlu0
      %v409 = vpop.trf.xlu0
      %v410 = vpop.trf.xlu0
      %v411 = vpop.trf.xlu0
      %v412 = vpop.trf.xlu0
      %v413 = vpop.trf.xlu0
      %v414 = vpop.trf.xlu0
      %415 = vxpose.xlu0.b32.start [1/16] %v143, 128
      %416 = vxpose.xlu0.b32.cont [2/16] %v144, 128
      %417 = vxpose.xlu0.b32.cont [3/16] %v145, 128
      %418 = vxpose.xlu0.b32.cont [4/16] %v146, 128
      %419 = vxpose.xlu0.b32.cont [5/16] %v147, 128
      %420 = vxpose.xlu0.b32.cont [6/16] %v148, 128
      %421 = vxpose.xlu0.b32.cont [7/16] %v149, 128
      %422 = vxpose.xlu0.b32.cont [8/16] %v150, 128
      %423 = vxpose.xlu0.b32.cont [9/16] %v151, 128
      %424 = vxpose.xlu0.b32.cont [10/16] %v152, 128
      %425 = vxpose.xlu0.b32.cont [11/16] %v153, 128
      %426 = vxpose.xlu0.b32.cont [12/16] %v154, 128
      %427 = vxpose.xlu0.b32.cont [13/16] %v155, 128
      %428 = vxpose.xlu0.b32.cont [14/16] %v156, 128
      %429 = vxpose.xlu0.b32.cont [15/16] %v157, 128
      %430 = vxpose.xlu0.b32.end [16/16] %v158, 128
      %v431 = vpop.trf.xlu0
      %v432 = vpop.trf.xlu0
      %v433 = vpop.trf.xlu0
      %v434 = vpop.trf.xlu0
      %v435 = vpop.trf.xlu0
      %v436 = vpop.trf.xlu0
      %v437 = vpop.trf.xlu0
      %v438 = vpop.trf.xlu0
      %v439 = vpop.trf.xlu0
      %v440 = vpop.trf.xlu0
      %v441 = vpop.trf.xlu0
      %v442 = vpop.trf.xlu0
      %v443 = vpop.trf.xlu0
      %v444 = vpop.trf.xlu0
      %v445 = vpop.trf.xlu0
      %v446 = vpop.trf.xlu0
      %447 = vxpose.xlu0.b32.start [1/16] %v159, 128
      %448 = vxpose.xlu0.b32.cont [2/16] %v160, 128
      %449 = vxpose.xlu0.b32.cont [3/16] %v161, 128
      %450 = vxpose.xlu0.b32.cont [4/16] %v162, 128
      %451 = vxpose.xlu0.b32.cont [5/16] %v163, 128
      %452 = vxpose.xlu0.b32.cont [6/16] %v164, 128
      %453 = vxpose.xlu0.b32.cont [7/16] %v165, 128
      %454 = vxpose.xlu0.b32.cont [8/16] %v166, 128
      %455 = vxpose.xlu0.b32.cont [9/16] %v167, 128
      %456 = vxpose.xlu0.b32.cont [10/16] %v168, 128
      %457 = vxpose.xlu0.b32.cont [11/16] %v169, 128
      %458 = vxpose.xlu0.b32.cont [12/16] %v170, 128
      %459 = vxpose.xlu0.b32.cont [13/16] %v171, 128
      %460 = vxpose.xlu0.b32.cont [14/16] %v172, 128
      %461 = vxpose.xlu0.b32.cont [15/16] %v173, 128
      %462 = vxpose.xlu0.b32.end [16/16] %v174, 128
      %v463 = vpop.trf.xlu0
      %v464 = vpop.trf.xlu0
      %v465 = vpop.trf.xlu0
      %v466 = vpop.trf.xlu0
      %v467 = vpop.trf.xlu0
      %v468 = vpop.trf.xlu0
      %v469 = vpop.trf.xlu0
      %v470 = vpop.trf.xlu0
      %v471 = vpop.trf.xlu0
      %v472 = vpop.trf.xlu0
      %v473 = vpop.trf.xlu0
      %v474 = vpop.trf.xlu0
      %v475 = vpop.trf.xlu0
      %v476 = vpop.trf.xlu0
      %v477 = vpop.trf.xlu0
      %v478 = vpop.trf.xlu0
      %479 = vxpose.xlu0.b32.start [1/16] %v175, 128
      %480 = vxpose.xlu0.b32.cont [2/16] %v176, 128
      %481 = vxpose.xlu0.b32.cont [3/16] %v177, 128
      %482 = vxpose.xlu0.b32.cont [4/16] %v178, 128
      %483 = vxpose.xlu0.b32.cont [5/16] %v179, 128
      %484 = vxpose.xlu0.b32.cont [6/16] %v180, 128
      %485 = vxpose.xlu0.b32.cont [7/16] %v181, 128
      %486 = vxpose.xlu0.b32.cont [8/16] %v182, 128
      %487 = vxpose.xlu0.b32.cont [9/16] %v183, 128
      %488 = vxpose.xlu0.b32.cont [10/16] %v184, 128
      %489 = vxpose.xlu0.b32.cont [11/16] %v185, 128
      %490 = vxpose.xlu0.b32.cont [12/16] %v186, 128
      %491 = vxpose.xlu0.b32.cont [13/16] %v187, 128
      %492 = vxpose.xlu0.b32.cont [14/16] %v188, 128
      %493 = vxpose.xlu0.b32.cont [15/16] %v189, 128
      %494 = vxpose.xlu0.b32.end [16/16] %v190, 128
      %v495 = vpop.trf.xlu0
      %v496 = vpop.trf.xlu0
      %v497 = vpop.trf.xlu0
      %v498 = vpop.trf.xlu0
      %v499 = vpop.trf.xlu0
      %v500 = vpop.trf.xlu0
      %v501 = vpop.trf.xlu0
      %v502 = vpop.trf.xlu0
      %v503 = vpop.trf.xlu0
      %v504 = vpop.trf.xlu0
      %v505 = vpop.trf.xlu0
      %v506 = vpop.trf.xlu0
      %v507 = vpop.trf.xlu0
      %v508 = vpop.trf.xlu0
      %v509 = vpop.trf.xlu0
      %v510 = vpop.trf.xlu0
      %511 = vxpose.xlu0.b32.start [1/16] %v191, 128
      %512 = vxpose.xlu0.b32.cont [2/16] %v192, 128
      %513 = vxpose.xlu0.b32.cont [3/16] %v193, 128
      %514 = vxpose.xlu0.b32.cont [4/16] %v194, 128
      %515 = vxpose.xlu0.b32.cont [5/16] %v195, 128
      %516 = vxpose.xlu0.b32.cont [6/16] %v196, 128
      %517 = vxpose.xlu0.b32.cont [7/16] %v197, 128
      %518 = vxpose.xlu0.b32.cont [8/16] %v198, 128
      %519 = vxpose.xlu0.b32.cont [9/16] %v199, 128
      %520 = vxpose.xlu0.b32.cont [10/16] %v200, 128
      %521 = vxpose.xlu0.b32.cont [11/16] %v201, 128
      %522 = vxpose.xlu0.b32.cont [12/16] %v202, 128
      %523 = vxpose.xlu0.b32.cont [13/16] %v203, 128
      %524 = vxpose.xlu0.b32.cont [14/16] %v204, 128
      %525 = vxpose.xlu0.b32.cont [15/16] %v205, 128
      %526 = vxpose.xlu0.b32.end [16/16] %v206, 128
      %v527 = vpop.trf.xlu0
      %v528 = vpop.trf.xlu0
      %v529 = vpop.trf.xlu0
      %v530 = vpop.trf.xlu0
      %v531 = vpop.trf.xlu0
      %v532 = vpop.trf.xlu0
      %v533 = vpop.trf.xlu0
      %v534 = vpop.trf.xlu0
      %v535 = vpop.trf.xlu0
      %v536 = vpop.trf.xlu0
      %v537 = vpop.trf.xlu0
      %v538 = vpop.trf.xlu0
      %v539 = vpop.trf.xlu0
      %v540 = vpop.trf.xlu0
      %v541 = vpop.trf.xlu0
      %v542 = vpop.trf.xlu0
      %543 = vxpose.xlu0.b32.start [1/16] %v207, 128
      %544 = vxpose.xlu0.b32.cont [2/16] %v208, 128
      %545 = vxpose.xlu0.b32.cont [3/16] %v209, 128
      %546 = vxpose.xlu0.b32.cont [4/16] %v210, 128
      %547 = vxpose.xlu0.b32.cont [5/16] %v211, 128
      %548 = vxpose.xlu0.b32.cont [6/16] %v212, 128
      %549 = vxpose.xlu0.b32.cont [7/16] %v213, 128
      %550 = vxpose.xlu0.b32.cont [8/16] %v214, 128
      %551 = vxpose.xlu0.b32.cont [9/16] %v215, 128
      %552 = vxpose.xlu0.b32.cont [10/16] %v216, 128
      %553 = vxpose.xlu0.b32.cont [11/16] %v217, 128
      %554 = vxpose.xlu0.b32.cont [12/16] %v218, 128
      %555 = vxpose.xlu0.b32.cont [13/16] %v219, 128
      %556 = vxpose.xlu0.b32.cont [14/16] %v220, 128
      %557 = vxpose.xlu0.b32.cont [15/16] %v221, 128
      %558 = vxpose.xlu0.b32.end [16/16] %v222, 128
      %v559 = vpop.trf.xlu0
      %v560 = vpop.trf.xlu0
      %v561 = vpop.trf.xlu0
      %v562 = vpop.trf.xlu0
      %v563 = vpop.trf.xlu0
      %v564 = vpop.trf.xlu0
      %v565 = vpop.trf.xlu0
      %v566 = vpop.trf.xlu0
      %v567 = vpop.trf.xlu0
      %v568 = vpop.trf.xlu0
      %v569 = vpop.trf.xlu0
      %v570 = vpop.trf.xlu0
      %v571 = vpop.trf.xlu0
      %v572 = vpop.trf.xlu0
      %v573 = vpop.trf.xlu0
      %v574 = vpop.trf.xlu0
      %575 = vxpose.xlu0.b32.start [1/16] %v223, 128
      %576 = vxpose.xlu0.b32.cont [2/16] %v224, 128
      %577 = vxpose.xlu0.b32.cont [3/16] %v225, 128
      %578 = vxpose.xlu0.b32.cont [4/16] %v226, 128
      %579 = vxpose.xlu0.b32.cont [5/16] %v227, 128
      %580 = vxpose.xlu0.b32.cont [6/16] %v228, 128
      %581 = vxpose.xlu0.b32.cont [7/16] %v229, 128
      %582 = vxpose.xlu0.b32.cont [8/16] %v230, 128
      %583 = vxpose.xlu0.b32.cont [9/16] %v231, 128
      %584 = vxpose.xlu0.b32.cont [10/16] %v232, 128
      %585 = vxpose.xlu0.b32.cont [11/16] %v233, 128
      %586 = vxpose.xlu0.b32.cont [12/16] %v234, 128
      %587 = vxpose.xlu0.b32.cont [13/16] %v235, 128
      %588 = vxpose.xlu0.b32.cont [14/16] %v236, 128
      %589 = vxpose.xlu0.b32.cont [15/16] %v237, 128
      %590 = vxpose.xlu0.b32.end [16/16] %v238, 128
      %v591 = vpop.trf.xlu0
      %v592 = vpop.trf.xlu0
      %v593 = vpop.trf.xlu0
      %v594 = vpop.trf.xlu0
      %v595 = vpop.trf.xlu0
      %v596 = vpop.trf.xlu0
      %v597 = vpop.trf.xlu0
      %v598 = vpop.trf.xlu0
      %v599 = vpop.trf.xlu0
      %v600 = vpop.trf.xlu0
      %v601 = vpop.trf.xlu0
      %v602 = vpop.trf.xlu0
      %v603 = vpop.trf.xlu0
      %v604 = vpop.trf.xlu0
      %v605 = vpop.trf.xlu0
      %v606 = vpop.trf.xlu0
      %607 = vxpose.xlu0.b32.start [1/16] %v239, 128
      %608 = vxpose.xlu0.b32.cont [2/16] %v240, 128
      %609 = vxpose.xlu0.b32.cont [3/16] %v241, 128
      %610 = vxpose.xlu0.b32.cont [4/16] %v242, 128
      %611 = vxpose.xlu0.b32.cont [5/16] %v243, 128
      %612 = vxpose.xlu0.b32.cont [6/16] %v244, 128
      %613 = vxpose.xlu0.b32.cont [7/16] %v245, 128
      %614 = vxpose.xlu0.b32.cont [8/16] %v246, 128
      %615 = vxpose.xlu0.b32.cont [9/16] %v247, 128
      %616 = vxpose.xlu0.b32.cont [10/16] %v248, 128
      %617 = vxpose.xlu0.b32.cont [11/16] %v249, 128
      %618 = vxpose.xlu0.b32.cont [12/16] %v250, 128
      %619 = vxpose.xlu0.b32.cont [13/16] %v251, 128
      %620 = vxpose.xlu0.b32.cont [14/16] %v252, 128
      %621 = vxpose.xlu0.b32.cont [15/16] %v253, 128
      %622 = vxpose.xlu0.b32.end [16/16] %v254, 128
      %v623 = vpop.trf.xlu0
      %v624 = vpop.trf.xlu0
      %v625 = vpop.trf.xlu0
      %v626 = vpop.trf.xlu0
      %v627 = vpop.trf.xlu0
      %v628 = vpop.trf.xlu0
      %v629 = vpop.trf.xlu0
      %v630 = vpop.trf.xlu0
      %v631 = vpop.trf.xlu0
      %v632 = vpop.trf.xlu0
      %v633 = vpop.trf.xlu0
      %v634 = vpop.trf.xlu0
      %v635 = vpop.trf.xlu0
      %v636 = vpop.trf.xlu0
      %v637 = vpop.trf.xlu0
      %v638 = vpop.trf.xlu0
      %v639 = vcombine.low %v399, %v463
      %v640 = vcombine.high %v399, %v463
      %v642 = vunpack.c.l.s4 1983009808
      %v643 = vunpack.c.0.s8 %v642
      %v644 = vlaneseq
      %v645 = vshrl.u32 %v644, 7
      %v646 = vsub.s32 %v643, %v645
      %v647 = vrot.slane %v639, %v646
      %v649 = vunpack.c.l.s4 1983009808
      %v650 = vunpack.c.0.s8 %v649
      %v651 = vlaneseq
      %v652 = vshrl.u32 %v651, 7
      %v653 = vsub.s32 %v650, %v652
      %v654 = vrot.slane %v640, %v653
      %v655 = vcombine.low %v431, %v495
      %v656 = vcombine.high %v431, %v495
      %v658 = vunpack.c.l.s4 1983009808
      %v659 = vunpack.c.0.s8 %v658
      %v660 = vlaneseq
      %v661 = vshrl.u32 %v660, 7
      %v662 = vsub.s32 %v659, %v661
      %v663 = vrot.slane %v655, %v662
      %v665 = vunpack.c.l.s4 1983009808
      %v666 = vunpack.c.0.s8 %v665
      %v667 = vlaneseq
      %v668 = vshrl.u32 %v667, 7
      %v669 = vsub.s32 %v666, %v668
      %v670 = vrot.slane %v656, %v669
      %v671 = vcombine.low %v527, %v591
      %v672 = vcombine.high %v527, %v591
      %v674 = vunpack.c.l.s4 1983009808
      %v675 = vunpack.c.0.s8 %v674
      %v676 = vlaneseq
      %v677 = vshrl.u32 %v676, 7
      %v678 = vsub.s32 %v675, %v677
      %v679 = vrot.slane %v671, %v678
      %v681 = vunpack.c.l.s4 1983009808
      %v682 = vunpack.c.0.s8 %v681
      %v683 = vlaneseq
      %v684 = vshrl.u32 %v683, 7
      %v685 = vsub.s32 %v682, %v684
      %v686 = vrot.slane %v672, %v685
      %v687 = vcombine.low %v559, %v623
      %v688 = vcombine.high %v559, %v623
      %v690 = vunpack.c.l.s4 1983009808
      %v691 = vunpack.c.0.s8 %v690
      %v692 = vlaneseq
      %v693 = vshrl.u32 %v692, 7
      %v694 = vsub.s32 %v691, %v693
      %v695 = vrot.slane %v687, %v694
      %v697 = vunpack.c.l.s4 1983009808
      %v698 = vunpack.c.0.s8 %v697
      %v699 = vlaneseq
      %v700 = vshrl.u32 %v699, 7
      %v701 = vsub.s32 %v698, %v700
      %v702 = vrot.slane %v688, %v701
      %v703 = vcombine.low %v647, %v663
      %v704 = vcombine.high %v647, %v663
      %v706 = vunpack.c.l.s4 1934713408
      %v707 = vunpack.c.0.s8 %v706
      %v708 = vlaneseq
      %v709 = vshrl.u32 %v708, 7
      %v710 = vsub.s32 %v707, %v709
      %v711 = vrot.slane %v703, %v710
      %v713 = vunpack.c.l.s4 1934713408
      %v714 = vunpack.c.0.s8 %v713
      %v715 = vlaneseq
      %v716 = vshrl.u32 %v715, 7
      %v717 = vsub.s32 %v714, %v716
      %v718 = vrot.slane %v704, %v717
      %v719 = vcombine.low %v654, %v670
      %v720 = vcombine.high %v654, %v670
      %v722 = vunpack.c.l.s4 1934713408
      %v723 = vunpack.c.0.s8 %v722
      %v724 = vlaneseq
      %v725 = vshrl.u32 %v724, 7
      %v726 = vsub.s32 %v723, %v725
      %v727 = vrot.slane %v719, %v726
      %v729 = vunpack.c.l.s4 1934713408
      %v730 = vunpack.c.0.s8 %v729
      %v731 = vlaneseq
      %v732 = vshrl.u32 %v731, 7
      %v733 = vsub.s32 %v730, %v732
      %v734 = vrot.slane %v720, %v733
      %v735 = vcombine.low %v679, %v695
      %v736 = vcombine.high %v679, %v695
      %v738 = vunpack.c.l.s4 1934713408
      %v739 = vunpack.c.0.s8 %v738
      %v740 = vlaneseq
      %v741 = vshrl.u32 %v740, 7
      %v742 = vsub.s32 %v739, %v741
      %v743 = vrot.slane %v735, %v742
      %v745 = vunpack.c.l.s4 1934713408
      %v746 = vunpack.c.0.s8 %v745
      %v747 = vlaneseq
      %v748 = vshrl.u32 %v747, 7
      %v749 = vsub.s32 %v746, %v748
      %v750 = vrot.slane %v736, %v749
      %v751 = vcombine.low %v686, %v702
      %v752 = vcombine.high %v686, %v702
      %v754 = vunpack.c.l.s4 1934713408
      %v755 = vunpack.c.0.s8 %v754
      %v756 = vlaneseq
      %v757 = vshrl.u32 %v756, 7
      %v758 = vsub.s32 %v755, %v757
      %v759 = vrot.slane %v751, %v758
      %v761 = vunpack.c.l.s4 1934713408
      %v762 = vunpack.c.0.s8 %v761
      %v763 = vlaneseq
      %v764 = vshrl.u32 %v763, 7
      %v765 = vsub.s32 %v762, %v764
      %v766 = vrot.slane %v752, %v765
      %v767 = vcombine.low %v711, %v743
      %v768 = vcombine.high %v711, %v743
      %v769 = vcombine.low %v718, %v750
      %v770 = vcombine.high %v718, %v750
      %v771 = vcombine.low %v727, %v759
      %v772 = vcombine.high %v727, %v759
      %v773 = vcombine.low %v734, %v766
      %v774 = vcombine.high %v734, %v766
      %v775 = vcombine.low %v400, %v464
      %v777 = vunpack.c.l.s4 1983009808
      %v778 = vunpack.c.0.s8 %v777
      %v779 = vlaneseq
      %v780 = vshrl.u32 %v779, 7
      %v781 = vsub.s32 %v778, %v780
      %v782 = vrot.slane %v775, %v781
      %v783 = vcombine.low %v432, %v496
      %v785 = vunpack.c.l.s4 1983009808
      %v786 = vunpack.c.0.s8 %v785
      %v787 = vlaneseq
      %v788 = vshrl.u32 %v787, 7
      %v789 = vsub.s32 %v786, %v788
      %v790 = vrot.slane %v783, %v789
      %v791 = vcombine.low %v528, %v592
      %v793 = vunpack.c.l.s4 1983009808
      %v794 = vunpack.c.0.s8 %v793
      %v795 = vlaneseq
      %v796 = vshrl.u32 %v795, 7
      %v797 = vsub.s32 %v794, %v796
      %v798 = vrot.slane %v791, %v797
      %v799 = vcombine.low %v560, %v624
      %v801 = vunpack.c.l.s4 1983009808
      %v802 = vunpack.c.0.s8 %v801
      %v803 = vlaneseq
      %v804 = vshrl.u32 %v803, 7
      %v805 = vsub.s32 %v802, %v804
      %v806 = vrot.slane %v799, %v805
      %v807 = vcombine.low %v782, %v790
      %v809 = vunpack.c.l.s4 1934713408
      %v810 = vunpack.c.0.s8 %v809
      %v811 = vlaneseq
      %v812 = vshrl.u32 %v811, 7
      %v813 = vsub.s32 %v810, %v812
      %v814 = vrot.slane %v807, %v813
      %v815 = vcombine.low %v798, %v806
      %v817 = vunpack.c.l.s4 1934713408
      %v818 = vunpack.c.0.s8 %v817
      %v819 = vlaneseq
      %v820 = vshrl.u32 %v819, 7
      %v821 = vsub.s32 %v818, %v820
      %v822 = vrot.slane %v815, %v821
      %v823 = vcombine.low %v814, %v822
      %824 = vxpose.xlu0.b32.start [1/16] %v255, 128
      %825 = vxpose.xlu0.b32.cont [2/16] %v256, 128
      %826 = vxpose.xlu0.b32.cont [3/16] %v257, 128
      %827 = vxpose.xlu0.b32.cont [4/16] %v258, 128
      %828 = vxpose.xlu0.b32.cont [5/16] %v259, 128
      %829 = vxpose.xlu0.b32.cont [6/16] %v260, 128
      %830 = vxpose.xlu0.b32.cont [7/16] %v261, 128
      %831 = vxpose.xlu0.b32.cont [8/16] %v262, 128
      %832 = vxpose.xlu0.b32.cont [9/16] %v263, 128
      %833 = vxpose.xlu0.b32.cont [10/16] %v264, 128
      %834 = vxpose.xlu0.b32.cont [11/16] %v265, 128
      %835 = vxpose.xlu0.b32.cont [12/16] %v266, 128
      %836 = vxpose.xlu0.b32.cont [13/16] %v267, 128
      %837 = vxpose.xlu0.b32.cont [14/16] %v268, 128
      %838 = vxpose.xlu0.b32.cont [15/16] %v269, 128
      %839 = vxpose.xlu0.b32.end [16/16] %v270, 128
      %v840 = vpop.trf.xlu0
      %v841 = vpop.trf.xlu0
      %v842 = vpop.trf.xlu0
      %v843 = vpop.trf.xlu0
      %v844 = vpop.trf.xlu0
      %v845 = vpop.trf.xlu0
      %v846 = vpop.trf.xlu0
      %v847 = vpop.trf.xlu0
      %v848 = vpop.trf.xlu0
      %v849 = vpop.trf.xlu0
      %v850 = vpop.trf.xlu0
      %v851 = vpop.trf.xlu0
      %v852 = vpop.trf.xlu0
      %v853 = vpop.trf.xlu0
      %v854 = vpop.trf.xlu0
      %v855 = vpop.trf.xlu0
      %856 = vxpose.xlu0.b32.start [1/16] %v271, 128
      %857 = vxpose.xlu0.b32.cont [2/16] %v272, 128
      %858 = vxpose.xlu0.b32.cont [3/16] %v273, 128
      %859 = vxpose.xlu0.b32.cont [4/16] %v274, 128
      %860 = vxpose.xlu0.b32.cont [5/16] %v275, 128
      %861 = vxpose.xlu0.b32.cont [6/16] %v276, 128
      %862 = vxpose.xlu0.b32.cont [7/16] %v277, 128
      %863 = vxpose.xlu0.b32.cont [8/16] %v278, 128
      %864 = vxpose.xlu0.b32.cont [9/16] %v279, 128
      %865 = vxpose.xlu0.b32.cont [10/16] %v280, 128
      %866 = vxpose.xlu0.b32.cont [11/16] %v281, 128
      %867 = vxpose.xlu0.b32.cont [12/16] %v282, 128
      %868 = vxpose.xlu0.b32.cont [13/16] %v283, 128
      %869 = vxpose.xlu0.b32.cont [14/16] %v284, 128
      %870 = vxpose.xlu0.b32.cont [15/16] %v285, 128
      %871 = vxpose.xlu0.b32.end [16/16] %v286, 128
      %v872 = vpop.trf.xlu0
      %v873 = vpop.trf.xlu0
      %v874 = vpop.trf.xlu0
      %v875 = vpop.trf.xlu0
      %v876 = vpop.trf.xlu0
      %v877 = vpop.trf.xlu0
      %v878 = vpop.trf.xlu0
      %v879 = vpop.trf.xlu0
      %v880 = vpop.trf.xlu0
      %v881 = vpop.trf.xlu0
      %v882 = vpop.trf.xlu0
      %v883 = vpop.trf.xlu0
      %v884 = vpop.trf.xlu0
      %v885 = vpop.trf.xlu0
      %v886 = vpop.trf.xlu0
      %v887 = vpop.trf.xlu0
      %888 = vxpose.xlu0.b32.start [1/16] %v287, 128
      %889 = vxpose.xlu0.b32.cont [2/16] %v288, 128
      %890 = vxpose.xlu0.b32.cont [3/16] %v289, 128
      %891 = vxpose.xlu0.b32.cont [4/16] %v290, 128
      %892 = vxpose.xlu0.b32.cont [5/16] %v291, 128
      %893 = vxpose.xlu0.b32.cont [6/16] %v292, 128
      %894 = vxpose.xlu0.b32.cont [7/16] %v293, 128
      %895 = vxpose.xlu0.b32.cont [8/16] %v294, 128
      %896 = vxpose.xlu0.b32.cont [9/16] %v295, 128
      %897 = vxpose.xlu0.b32.cont [10/16] %v296, 128
      %898 = vxpose.xlu0.b32.cont [11/16] %v297, 128
      %899 = vxpose.xlu0.b32.cont [12/16] %v298, 128
      %900 = vxpose.xlu0.b32.cont [13/16] %v299, 128
      %901 = vxpose.xlu0.b32.cont [14/16] %v300, 128
      %902 = vxpose.xlu0.b32.cont [15/16] %v301, 128
      %903 = vxpose.xlu0.b32.end [16/16] %v302, 128
      %v904 = vpop.trf.xlu0
      %v905 = vpop.trf.xlu0
      %v906 = vpop.trf.xlu0
      %v907 = vpop.trf.xlu0
      %v908 = vpop.trf.xlu0
      %v909 = vpop.trf.xlu0
      %v910 = vpop.trf.xlu0
      %v911 = vpop.trf.xlu0
      %v912 = vpop.trf.xlu0
      %v913 = vpop.trf.xlu0
      %v914 = vpop.trf.xlu0
      %v915 = vpop.trf.xlu0
      %v916 = vpop.trf.xlu0
      %v917 = vpop.trf.xlu0
      %v918 = vpop.trf.xlu0
      %v919 = vpop.trf.xlu0
      %920 = vxpose.xlu0.b32.start [1/16] %v303, 128
      %921 = vxpose.xlu0.b32.cont [2/16] %v304, 128
      %922 = vxpose.xlu0.b32.cont [3/16] %v305, 128
      %923 = vxpose.xlu0.b32.cont [4/16] %v306, 128
      %924 = vxpose.xlu0.b32.cont [5/16] %v307, 128
      %925 = vxpose.xlu0.b32.cont [6/16] %v308, 128
      %926 = vxpose.xlu0.b32.cont [7/16] %v309, 128
      %927 = vxpose.xlu0.b32.cont [8/16] %v310, 128
      %928 = vxpose.xlu0.b32.cont [9/16] %v311, 128
      %929 = vxpose.xlu0.b32.cont [10/16] %v312, 128
      %930 = vxpose.xlu0.b32.cont [11/16] %v313, 128
      %931 = vxpose.xlu0.b32.cont [12/16] %v314, 128
      %932 = vxpose.xlu0.b32.cont [13/16] %v315, 128
      %933 = vxpose.xlu0.b32.cont [14/16] %v316, 128
      %934 = vxpose.xlu0.b32.cont [15/16] %v317, 128
      %935 = vxpose.xlu0.b32.end [16/16] %v318, 128
      %v936 = vpop.trf.xlu0
      %v937 = vpop.trf.xlu0
      %v938 = vpop.trf.xlu0
      %v939 = vpop.trf.xlu0
      %v940 = vpop.trf.xlu0
      %v941 = vpop.trf.xlu0
      %v942 = vpop.trf.xlu0
      %v943 = vpop.trf.xlu0
      %v944 = vpop.trf.xlu0
      %v945 = vpop.trf.xlu0
      %v946 = vpop.trf.xlu0
      %v947 = vpop.trf.xlu0
      %v948 = vpop.trf.xlu0
      %v949 = vpop.trf.xlu0
      %v950 = vpop.trf.xlu0
      %v951 = vpop.trf.xlu0
      %952 = vxpose.xlu0.b32.start [1/16] %v319, 128
      %953 = vxpose.xlu0.b32.cont [2/16] %v320, 128
      %954 = vxpose.xlu0.b32.cont [3/16] %v321, 128
      %955 = vxpose.xlu0.b32.cont [4/16] %v322, 128
      %956 = vxpose.xlu0.b32.cont [5/16] %v323, 128
      %957 = vxpose.xlu0.b32.cont [6/16] %v324, 128
      %958 = vxpose.xlu0.b32.cont [7/16] %v325, 128
      %959 = vxpose.xlu0.b32.cont [8/16] %v326, 128
      %960 = vxpose.xlu0.b32.cont [9/16] %v327, 128
      %961 = vxpose.xlu0.b32.cont [10/16] %v328, 128
      %962 = vxpose.xlu0.b32.cont [11/16] %v329, 128
      %963 = vxpose.xlu0.b32.cont [12/16] %v330, 128
      %964 = vxpose.xlu0.b32.cont [13/16] %v331, 128
      %965 = vxpose.xlu0.b32.cont [14/16] %v332, 128
      %966 = vxpose.xlu0.b32.cont [15/16] %v333, 128
      %967 = vxpose.xlu0.b32.end [16/16] %v334, 128
      %v968 = vpop.trf.xlu0
      %v969 = vpop.trf.xlu0
      %v970 = vpop.trf.xlu0
      %v971 = vpop.trf.xlu0
      %v972 = vpop.trf.xlu0
      %v973 = vpop.trf.xlu0
      %v974 = vpop.trf.xlu0
      %v975 = vpop.trf.xlu0
      %v976 = vpop.trf.xlu0
      %v977 = vpop.trf.xlu0
      %v978 = vpop.trf.xlu0
      %v979 = vpop.trf.xlu0
      %v980 = vpop.trf.xlu0
      %v981 = vpop.trf.xlu0
      %v982 = vpop.trf.xlu0
      %v983 = vpop.trf.xlu0
      %984 = vxpose.xlu0.b32.start [1/16] %v335, 128
      %985 = vxpose.xlu0.b32.cont [2/16] %v336, 128
      %986 = vxpose.xlu0.b32.cont [3/16] %v337, 128
      %987 = vxpose.xlu0.b32.cont [4/16] %v338, 128
      %988 = vxpose.xlu0.b32.cont [5/16] %v339, 128
      %989 = vxpose.xlu0.b32.cont [6/16] %v340, 128
      %990 = vxpose.xlu0.b32.cont [7/16] %v341, 128
      %991 = vxpose.xlu0.b32.cont [8/16] %v342, 128
      %992 = vxpose.xlu0.b32.cont [9/16] %v343, 128
      %993 = vxpose.xlu0.b32.cont [10/16] %v344, 128
      %994 = vxpose.xlu0.b32.cont [11/16] %v345, 128
      %995 = vxpose.xlu0.b32.cont [12/16] %v346, 128
      %996 = vxpose.xlu0.b32.cont [13/16] %v347, 128
      %997 = vxpose.xlu0.b32.cont [14/16] %v348, 128
      %998 = vxpose.xlu0.b32.cont [15/16] %v349, 128
      %999 = vxpose.xlu0.b32.end [16/16] %v350, 128
      %v1000 = vpop.trf.xlu0
      %v1001 = vpop.trf.xlu0
      %v1002 = vpop.trf.xlu0
      %v1003 = vpop.trf.xlu0
      %v1004 = vpop.trf.xlu0
      %v1005 = vpop.trf.xlu0
      %v1006 = vpop.trf.xlu0
      %v1007 = vpop.trf.xlu0
      %v1008 = vpop.trf.xlu0
      %v1009 = vpop.trf.xlu0
      %v1010 = vpop.trf.xlu0
      %v1011 = vpop.trf.xlu0
      %v1012 = vpop.trf.xlu0
      %v1013 = vpop.trf.xlu0
      %v1014 = vpop.trf.xlu0
      %v1015 = vpop.trf.xlu0
      %1016 = vxpose.xlu0.b32.start [1/16] %v351, 128
      %1017 = vxpose.xlu0.b32.cont [2/16] %v352, 128
      %1018 = vxpose.xlu0.b32.cont [3/16] %v353, 128
      %1019 = vxpose.xlu0.b32.cont [4/16] %v354, 128
      %1020 = vxpose.xlu0.b32.cont [5/16] %v355, 128
      %1021 = vxpose.xlu0.b32.cont [6/16] %v356, 128
      %1022 = vxpose.xlu0.b32.cont [7/16] %v357, 128
      %1023 = vxpose.xlu0.b32.cont [8/16] %v358, 128
      %1024 = vxpose.xlu0.b32.cont [9/16] %v359, 128
      %1025 = vxpose.xlu0.b32.cont [10/16] %v360, 128
      %1026 = vxpose.xlu0.b32.cont [11/16] %v361, 128
      %1027 = vxpose.xlu0.b32.cont [12/16] %v362, 128
      %1028 = vxpose.xlu0.b32.cont [13/16] %v363, 128
      %1029 = vxpose.xlu0.b32.cont [14/16] %v364, 128
      %1030 = vxpose.xlu0.b32.cont [15/16] %v365, 128
      %1031 = vxpose.xlu0.b32.end [16/16] %v366, 128
      %v1032 = vpop.trf.xlu0
      %v1033 = vpop.trf.xlu0
      %v1034 = vpop.trf.xlu0
      %v1035 = vpop.trf.xlu0
      %v1036 = vpop.trf.xlu0
      %v1037 = vpop.trf.xlu0
      %v1038 = vpop.trf.xlu0
      %v1039 = vpop.trf.xlu0
      %v1040 = vpop.trf.xlu0
      %v1041 = vpop.trf.xlu0
      %v1042 = vpop.trf.xlu0
      %v1043 = vpop.trf.xlu0
      %v1044 = vpop.trf.xlu0
      %v1045 = vpop.trf.xlu0
      %v1046 = vpop.trf.xlu0
      %v1047 = vpop.trf.xlu0
      %1048 = vxpose.xlu0.b32.start [1/16] %v367, 128
      %1049 = vxpose.xlu0.b32.cont [2/16] %v368, 128
      %1050 = vxpose.xlu0.b32.cont [3/16] %v369, 128
      %1051 = vxpose.xlu0.b32.cont [4/16] %v370, 128
      %1052 = vxpose.xlu0.b32.cont [5/16] %v371, 128
      %1053 = vxpose.xlu0.b32.cont [6/16] %v372, 128
      %1054 = vxpose.xlu0.b32.cont [7/16] %v373, 128
      %1055 = vxpose.xlu0.b32.cont [8/16] %v374, 128
      %1056 = vxpose.xlu0.b32.cont [9/16] %v375, 128
      %1057 = vxpose.xlu0.b32.cont [10/16] %v376, 128
      %1058 = vxpose.xlu0.b32.cont [11/16] %v377, 128
      %1059 = vxpose.xlu0.b32.cont [12/16] %v378, 128
      %1060 = vxpose.xlu0.b32.cont [13/16] %v379, 128
      %1061 = vxpose.xlu0.b32.cont [14/16] %v380, 128
      %1062 = vxpose.xlu0.b32.cont [15/16] %v381, 128
      %1063 = vxpose.xlu0.b32.end [16/16] %v382, 128
      %v1064 = vpop.trf.xlu0
      %v1065 = vpop.trf.xlu0
      %v1066 = vpop.trf.xlu0
      %v1067 = vpop.trf.xlu0
      %v1068 = vpop.trf.xlu0
      %v1069 = vpop.trf.xlu0
      %v1070 = vpop.trf.xlu0
      %v1071 = vpop.trf.xlu0
      %v1072 = vpop.trf.xlu0
      %v1073 = vpop.trf.xlu0
      %v1074 = vpop.trf.xlu0
      %v1075 = vpop.trf.xlu0
      %v1076 = vpop.trf.xlu0
      %v1077 = vpop.trf.xlu0
      %v1078 = vpop.trf.xlu0
      %v1079 = vpop.trf.xlu0
      %v1080 = vcombine.low %v840, %v904
      %v1081 = vcombine.high %v840, %v904
      %v1083 = vunpack.c.l.s4 1983009808
      %v1084 = vunpack.c.0.s8 %v1083
      %v1085 = vlaneseq
      %v1086 = vshrl.u32 %v1085, 7
      %v1087 = vsub.s32 %v1084, %v1086
      %v1088 = vrot.slane %v1080, %v1087
      %v1090 = vunpack.c.l.s4 1983009808
      %v1091 = vunpack.c.0.s8 %v1090
      %v1092 = vlaneseq
      %v1093 = vshrl.u32 %v1092, 7
      %v1094 = vsub.s32 %v1091, %v1093
      %v1095 = vrot.slane %v1081, %v1094
      %v1096 = vcombine.low %v872, %v936
      %v1097 = vcombine.high %v872, %v936
      %v1099 = vunpack.c.l.s4 1983009808
      %v1100 = vunpack.c.0.s8 %v1099
      %v1101 = vlaneseq
      %v1102 = vshrl.u32 %v1101, 7
      %v1103 = vsub.s32 %v1100, %v1102
      %v1104 = vrot.slane %v1096, %v1103
      %v1106 = vunpack.c.l.s4 1983009808
      %v1107 = vunpack.c.0.s8 %v1106
      %v1108 = vlaneseq
      %v1109 = vshrl.u32 %v1108, 7
      %v1110 = vsub.s32 %v1107, %v1109
      %v1111 = vrot.slane %v1097, %v1110
      %v1112 = vcombine.low %v968, %v1032
      %v1113 = vcombine.high %v968, %v1032
      %v1115 = vunpack.c.l.s4 1983009808
      %v1116 = vunpack.c.0.s8 %v1115
      %v1117 = vlaneseq
      %v1118 = vshrl.u32 %v1117, 7
      %v1119 = vsub.s32 %v1116, %v1118
      %v1120 = vrot.slane %v1112, %v1119
      %v1122 = vunpack.c.l.s4 1983009808
      %v1123 = vunpack.c.0.s8 %v1122
      %v1124 = vlaneseq
      %v1125 = vshrl.u32 %v1124, 7
      %v1126 = vsub.s32 %v1123, %v1125
      %v1127 = vrot.slane %v1113, %v1126
      %v1128 = vcombine.low %v1000, %v1064
      %v1129 = vcombine.high %v1000, %v1064
      %v1131 = vunpack.c.l.s4 1983009808
      %v1132 = vunpack.c.0.s8 %v1131
      %v1133 = vlaneseq
      %v1134 = vshrl.u32 %v1133, 7
      %v1135 = vsub.s32 %v1132, %v1134
      %v1136 = vrot.slane %v1128, %v1135
      %v1138 = vunpack.c.l.s4 1983009808
      %v1139 = vunpack.c.0.s8 %v1138
      %v1140 = vlaneseq
      %v1141 = vshrl.u32 %v1140, 7
      %v1142 = vsub.s32 %v1139, %v1141
      %v1143 = vrot.slane %v1129, %v1142
      %v1144 = vcombine.low %v1088, %v1104
      %v1145 = vcombine.high %v1088, %v1104
      %v1147 = vunpack.c.l.s4 1934713408
      %v1148 = vunpack.c.0.s8 %v1147
      %v1149 = vlaneseq
      %v1150 = vshrl.u32 %v1149, 7
      %v1151 = vsub.s32 %v1148, %v1150
      %v1152 = vrot.slane %v1144, %v1151
      %v1154 = vunpack.c.l.s4 1934713408
      %v1155 = vunpack.c.0.s8 %v1154
      %v1156 = vlaneseq
      %v1157 = vshrl.u32 %v1156, 7
      %v1158 = vsub.s32 %v1155, %v1157
      %v1159 = vrot.slane %v1145, %v1158
      %v1160 = vcombine.low %v1095, %v1111
      %v1162 = vunpack.c.l.s4 1934713408
      %v1163 = vunpack.c.0.s8 %v1162
      %v1164 = vlaneseq
      %v1165 = vshrl.u32 %v1164, 7
      %v1166 = vsub.s32 %v1163, %v1165
      %v1167 = vrot.slane %v1160, %v1166
      %v1168 = vcombine.low %v1120, %v1136
      %v1169 = vcombine.high %v1120, %v1136
      %v1171 = vunpack.c.l.s4 1934713408
      %v1172 = vunpack.c.0.s8 %v1171
      %v1173 = vlaneseq
      %v1174 = vshrl.u32 %v1173, 7
      %v1175 = vsub.s32 %v1172, %v1174
      %v1176 = vrot.slane %v1168, %v1175
      %v1178 = vunpack.c.l.s4 1934713408
      %v1179 = vunpack.c.0.s8 %v1178
      %v1180 = vlaneseq
      %v1181 = vshrl.u32 %v1180, 7
      %v1182 = vsub.s32 %v1179, %v1181
      %v1183 = vrot.slane %v1169, %v1182
      %v1184 = vcombine.low %v1127, %v1143
      %v1186 = vunpack.c.l.s4 1934713408
      %v1187 = vunpack.c.0.s8 %v1186
      %v1188 = vlaneseq
      %v1189 = vshrl.u32 %v1188, 7
      %v1190 = vsub.s32 %v1187, %v1189
      %v1191 = vrot.slane %v1184, %v1190
      %v1192 = vcombine.low %v1152, %v1176
      %v1193 = vcombine.high %v1152, %v1176
      %v1194 = vcombine.low %v1159, %v1183
      %v1195 = vcombine.high %v1159, %v1183
      %v1196 = vcombine.low %v1167, %v1191
      %v1197 = vcombine.high %v1167, %v1191
      %v1198 = vlaneseq
      %v1199 = vshrl.u32 %v1198, 7
      %v1200 = vlaneseq
      %v1201 = vand.u32 %v1200, 127
      %s1202 = smul.u32 %s122, 1024
      %v1203 = vmul.u32 %v1199, 128
      %v1204 = vstv %s1202
      %v1205 = vadd.s32 %v1204, %v1203
      %v1206 = vadd.s32 %v1205, %v1201
      %vm1207 = vcmp.lt.s32.totalorder %v1206, 1014
      %vm1208 = vcmp.eq.f32.partialorder %v1192, 1.0
      %vm1209 = vmand %vm1208, %vm1207
      %vm1210 = vcmp.eq.f32.partialorder %v1192, 0.0
      %vm1211 = vmand %vm1210, %vm1207
      %v1212 = vcvt.s32.f32 %v1206
      %v1213 = vmul.f32 %v1212, 0.00591716
      %v1214 = vadd.f32 %v1213, 0.00295858
      %v1215 = vfloor.f32 %v1214
      %v1216 = vmul.f32 %v1215, 0.33333334
      %v1217 = vadd.f32 %v1216, 0.16666667
      %v1218 = vfloor.f32 %v1217
      %v1219 = vmul.f32 %v1218, 3.0
      %v1220 = vsub.f32 %v1215, %v1219
      %vm1221 = vcmp.eq.f32.partialorder %v1220, 0.0
      %s1222 = sld [smem:[#allocation3]]
      %v1223 = vstv %s1222
      %v1224 = vsel %vm1221, %v1223, 0.0
      %s1225 = sld [smem:[#allocation3 + $0x1]]
      %v1226 = vstv %s1225
      %v1227 = vsel %vm1221, %v1226, 0.0
      %s1228 = sld [smem:[#allocation3 + $0x2]]
      %v1229 = vstv %s1228
      %v1230 = vsel %vm1221, %v1229, 0.0
      %s1231 = sld [smem:[#allocation3 + $0x3]]
      %v1232 = vstv %s1231
      %v1233 = vsel %vm1221, %v1232, 0.0
      %vm1234 = vcmp.eq.f32.partialorder %v1220, 1.0
      %s1235 = sld [smem:[#allocation3 + $0x4]]
      %v1236 = vstv %s1235
      %v1237 = vsel %vm1234, %v1236, %v1224
      %s1238 = sld [smem:[#allocation3 + $0x5]]
      %v1239 = vstv %s1238
      %v1240 = vsel %vm1234, %v1239, %v1227
      %s1241 = sld [smem:[#allocation3 + $0x6]]
      %v1242 = vstv %s1241
      %v1243 = vsel %vm1234, %v1242, %v1230
      %s1244 = sld [smem:[#allocation3 + $0x7]]
      %v1245 = vstv %s1244
      %v1246 = vsel %vm1234, %v1245, %v1233
      %vm1247 = vcmp.eq.f32.partialorder %v1220, 2.0
      %s1248 = sld [smem:[#allocation3 + $0x8]]
      %v1249 = vstv %s1248
      %v1250 = vsel %vm1247, %v1249, %v1237
      %s1251 = sld [smem:[#allocation3 + $0x9]]
      %v1252 = vstv %s1251
      %v1253 = vsel %vm1247, %v1252, %v1240
      %s1254 = sld [smem:[#allocation3 + $0xa]]
      %v1255 = vstv %s1254
      %v1256 = vsel %vm1247, %v1255, %v1243
      %s1257 = sld [smem:[#allocation3 + $0xb]]
      %v1258 = vstv %s1257
      %v1259 = vsel %vm1247, %v1258, %v1246
      %v1260 = vand.u32 2147483647, %v767
      %v1261 = vsub.f32 0.0, %v1260
      %v1262 = vmul.f32 %v1261, 1.442695
      %v1263 = vpow.pop %v1262
      %v1264 = vmax.f32 %v767, 0.0
      %v1265 = vmul.f32 %v767, %v1192
      %v1266 = vsub.f32 %v1264, %v1265
      %v1267 = vadd.f32 %v1263, 1.0
      %v1268 = vlog2.pop %v1267
      %v1269 = vmul.f32 %v1268, 0.6931472
      %v1270 = vadd.f32 %v1266, %v1269
      %v1271 = vrcp.pop %v1267
      %v1272 = vmul.f32 1.0, %v1271
      %vm1273 = vcmp.ge.f32.partialorder %v767, 0.0
      %v1274 = vsub.f32 1.0, %v1272
      %v1275 = vsel %vm1273, %v1272, %v1274
      %v1276 = vsub.f32 0.0, %v768
      %v1277 = vmul.f32 %v1276, 1.442695
      %v1278 = vpow.pop %v1277
      %v1279 = vadd.f32 %v1278, 1.0
      %v1280 = vrcp.pop %v1279
      %v1281 = vmul.f32 1.0, %v1280
      %v1282 = vsub.f32 0.0, %v769
      %v1283 = vmul.f32 %v1282, 1.442695
      %v1284 = vpow.pop %v1283
      %v1285 = vadd.f32 %v1284, 1.0
      %v1286 = vrcp.pop %v1285
      %v1287 = vmul.f32 1.0, %v1286
      %v1288 = vmul.f32 %v770, 1.442695
      %v1289 = vpow.pop %v1288
      %v1290 = vmul.f32 %v1289, %v1250
      %v1291 = vmul.f32 %v771, 1.442695
      %v1292 = vpow.pop %v1291
      %v1293 = vmul.f32 %v1292, %v1253
      %v1294 = vmul.f32 %v1290, 0.5
      %v1295 = vsub.f32 %v1281, %v1294
      %v1296 = vadd.f32 %v1281, %v1294
      %v1297 = vmul.f32 %v1293, 0.5
      %v1298 = vsub.f32 %v1287, %v1297
      %v1299 = vadd.f32 %v1287, %v1297
      %v1300 = vmul.f32 %v1195, 0.5
      %v1301 = vsub.f32 %v1193, %v1300
      %v1302 = vadd.f32 %v1193, %v1300
      %v1303 = vmul.f32 %v1196, 0.5
      %v1304 = vsub.f32 %v1194, %v1303
      %v1305 = vadd.f32 %v1194, %v1303
      %v1306 = vmin.f32 %v1296, %v1302
      %v1307 = vmax.f32 %v1295, %v1301
      %v1308 = vsub.f32 %v1306, %v1307
      %v1309 = vmax.f32 %v1308, 0.0
      %v1310 = vmin.f32 %v1299, %v1305
      %v1311 = vmax.f32 %v1298, %v1304
      %v1312 = vsub.f32 %v1310, %v1311
      %v1313 = vmax.f32 %v1312, 0.0
      %v1314 = vmul.f32 %v1309, %v1313
      %v1315 = vsub.f32 %v1296, %v1295
      %v1316 = vsub.f32 %v1299, %v1298
      %v1317 = vmul.f32 %v1315, %v1316
      %v1318 = vand.u32 2147483647, %v1317
      %v1319 = vsub.f32 %v1302, %v1301
      %v1320 = vsub.f32 %v1305, %v1304
      %v1321 = vmul.f32 %v1319, %v1320
      %v1322 = vand.u32 2147483647, %v1321
      %v1323 = vadd.f32 %v1318, %v1322
      %v1324 = vsub.f32 %v1323, %v1314
      %v1325 = vadd.f32 %v1324, 1e-06
      %v1326 = vrcp.pop %v1325
      %v1327 = vmul.f32 %v1314, %v1326
      %v1328 = vmul.f32 %v1327, %v1192
      %v1329 = vsub.f32 %v1275, %v1328
      %v1330 = vmul.f32 %v1329, %v1329
      %v1331 = vsub.f32 %v1281, %v1193
      %v1332 = vmul.f32 %v1331, %v1331
      %v1333 = vsub.f32 %v1287, %v1194
      %v1334 = vmul.f32 %v1333, %v1333
      %v1335 = vadd.f32 %v1332, %v1334
      %v1336 = vmul.f32 %v1195, %v1256
      %v1337 = vadd.f32 %v1336, 1e-06
      %v1338 = vlog2.pop %v1337
      %v1339 = vmul.f32 %v1338, 0.6931472
      %v1340 = vsub.f32 %v770, %v1339
      %v1341 = vmul.f32 %v1340, %v1340
      %v1342 = vadd.f32 %v1335, %v1341
      %v1343 = vmul.f32 %v1196, %v1259
      %v1344 = vadd.f32 %v1343, 1e-06
      %v1345 = vlog2.pop %v1344
      %v1346 = vmul.f32 %v1345, 0.6931472
      %v1347 = vsub.f32 %v771, %v1346
      %v1348 = vmul.f32 %v1347, %v1347
      %v1349 = vadd.f32 %v1342, %v1348
      %v1350 = vcvt.f32.s32.to.zero.pseudo %v1197
      %v1351 = vmax.f32 %v772, %v773
      %v1352 = vmax.f32 %v774, %v823
      %v1353 = vmax.f32 %v1351, %v1352
      %v1354 = vsub.f32 %v772, %v1353
      %v1355 = vsub.f32 %v773, %v1353
      %v1356 = vsub.f32 %v774, %v1353
      %v1357 = vsub.f32 %v823, %v1353
      %v1358 = vmul.f32 %v1354, 1.442695
      %v1359 = vpow.pop %v1358
      %v1360 = vmul.f32 %v1355, 1.442695
      %v1361 = vpow.pop %v1360
      %v1362 = vmul.f32 %v1356, 1.442695
      %v1363 = vpow.pop %v1362
      %v1364 = vmul.f32 %v1357, 1.442695
      %v1365 = vpow.pop %v1364
      %v1366 = vadd.f32 %v1359, %v1361
      %v1367 = vadd.f32 %v1366, %v1363
      %v1368 = vadd.f32 %v1367, %v1365
      %v1369 = vlog2.pop %v1368
      %v1370 = vmul.f32 %v1369, 0.6931472
      %v1371 = vadd.f32 %v1353, %v1370
      %vm1372 = vcmp.eq.s32.totalorder %v1350, 0
      %vm1373 = vcmp.eq.s32.totalorder %v1350, 1
      %vm1374 = vcmp.eq.s32.totalorder %v1350, 2
      %vm1375 = vcmp.eq.s32.totalorder %v1350, 3
      %v1376 = vsel %vm1372, %v772, 0.0
      %v1377 = vsel %vm1373, %v773, 0.0
      %v1378 = vsel %vm1374, %v774, 0.0
      %v1379 = vsel %vm1375, %v823, 0.0
      %v1380 = vadd.f32 %v1376, %v1377
      %v1381 = vadd.f32 %v1380, %v1378
      %v1382 = vadd.f32 %v1381, %v1379
      %v1383 = vsub.f32 %v1371, %v1382
      %v1384 = vld [vmem:[#allocation2] sm:$0xff]
      %v1385 = vsel %vm1209, %v1349, 0.0
      %v1386 = vadd.f32 %v1384, %v1385
      %1387 = vst [vmem:[#allocation2] sm:$0xff] %v1386
      %s1388 = scalar_lea.vmem [#allocation2], 8
      %v1389 = vld [vmem:[%s1388] sm:$0xff]
      %v1390 = vsel %vm1209, %v1330, 0.0
      %v1391 = vadd.f32 %v1389, %v1390
      %1392 = vst [vmem:[%s1388] sm:$0xff] %v1391
      %s1393 = scalar_lea.vmem [#allocation2], 16
      %v1394 = vld [vmem:[%s1393] sm:$0xff]
      %v1395 = vsel %vm1211, %v1270, 0.0
      %v1396 = vadd.f32 %v1394, %v1395
      %1397 = vst [vmem:[%s1393] sm:$0xff] %v1396
      %s1398 = scalar_lea.vmem [#allocation2], 24
      %v1399 = vld [vmem:[%s1398] sm:$0xff]
      %v1400 = vsel %vm1209, %v1383, 0.0
      %v1401 = vadd.f32 %v1399, %v1400
      %1402 = vst [vmem:[%s1398] sm:$0xff] %v1401
      %s1403 = scalar_lea.vmem [#allocation2], 32
      %v1404 = vld [vmem:[%s1403] sm:$0xff]
      %v1405 = vsel %vm1209, 1, 0
      %v1406 = vcvt.s32.f32 %v1405
      %v1407 = vadd.f32 %v1404, %v1406
      %1408 = vst [vmem:[%s1403] sm:$0xff] %v1407
      %s1409 = scalar_lea.vmem [#allocation2], 40
      %v1410 = vld [vmem:[%s1409] sm:$0xff]
      %v1411 = vsel %vm1211, 1, 0
      %v1412 = vcvt.s32.f32 %v1411
      %v1413 = vadd.f32 %v1410, %v1412
      %1414 = vst [vmem:[%s1409] sm:$0xff] %v1413
    $region25: #{tpu_custom_call.1} parent=1 // pred_fallthru
      _
    // Predicated region
    $region26: #{tpu_custom_call.1} parent=1 // pred_check
      %p1415 = pneg %p112
    $region27: #{tpu_custom_call.1} parent=1 // pred_check_branch
      %1417 = sbr.rel (%p1415) target = $region29
    $region28: #{tpu_custom_call.1} parent=1 // pred_region
      %v1418 = vld [vmem:[#allocation2] sm:$0xff]
      %v1419 = vld [vmem:[#allocation2 + $0x8] sm:$0xff]
      %v1420 = vld [vmem:[#allocation2 + $0x10] sm:$0xff]
      %v1421 = vld [vmem:[#allocation2 + $0x18] sm:$0xff]
      %v1422 = vld [vmem:[#allocation2 + $0x20] sm:$0xff]
      %v1423 = vld [vmem:[#allocation2 + $0x28] sm:$0xff]
      %1424 = vst [vmem:[#allocation6] sm:$0xff] %v1418
      %1425 = vst [vmem:[#allocation6 + $0x8] sm:$0xff] %v1419
      %1426 = vst [vmem:[#allocation6 + $0x10] sm:$0xff] %v1420
      %1427 = vst [vmem:[#allocation6 + $0x18] sm:$0xff] %v1421
      %1428 = vst [vmem:[#allocation6 + $0x20] sm:$0xff] %v1422
      %1429 = vst [vmem:[#allocation6 + $0x28] sm:$0xff] %v1423
    $region29: #{tpu_custom_call.1} parent=1 // pred_fallthru
      _
    // Predicated region
    $region30: #{tpu_custom_call.1} parent=1 // pred_check
      _
    $region31: #{tpu_custom_call.1} parent=1 // pred_check_branch
      %1431 = sbr.rel (0) target = $region33
    $region32: #{tpu_custom_call.1} parent=1 // pred_region
      %s1433 = ssub.s32 768, 768
      %1434 = vsyncadd [#allocation4], %s1433
      %s1435 = sshll.u32 [#allocation6], 4
      %s1436 = int_to_ptr.vmem [resolvable:$true] %s1435
      %1441 = dma.vmem_to_hbm [thread:$0]  %s1436, 768, %s3, [#allocation4], 128, 128, 8
    $region33: #{tpu_custom_call.1} parent=1 // pred_fallthru
      _
    // Predicated region
    $region34: #{tpu_custom_call.1} parent=1 // pred_check
      _
    $region35: #{tpu_custom_call.1} parent=1 // pred_check_branch
      %1443 = sbr.rel (0) target = $region37
    $region36: #{tpu_custom_call.1} parent=1 // pred_region
      %1444 = dma.done [#allocation4], 768
    $region37: #{tpu_custom_call.1} parent=1 // pred_fallthru
      _
    %1445 = vsyncpa [#allocation4], 1
    %1446 = vsyncpa [#allocation5], 1

</llo_original>
